<compile_context>
chip_gen: v7x
topology: tpu7x:2x2x1
jax: 0.10.0
libtpu: 0.0.40
codegen_flags: <defaults>
</compile_context>

<pallas_src>
import functools
import math

import jax
import jax.numpy as jnp
from jax.experimental import pallas as pl
from jax.experimental.pallas import tpu as pltpu


# ----------------------------- config ---------------------------------------
class SiglipVisionConfig:
    hidden_size = 32
    intermediate_size = 64
    num_hidden_layers = 2
    num_attention_heads = 4
    num_channels = 3
    image_size = 16
    patch_size = 4
    layer_norm_eps = 1e-6


# ----------------------------- shared math helpers ---------------------------
def _ln(x, g, b, eps):
    """f32 layernorm over the last axis."""
    mean = jnp.mean(x, axis=-1, keepdims=True)
    var = jnp.mean(jnp.square(x - mean), axis=-1, keepdims=True)
    return (x - mean) * jax.lax.rsqrt(var + eps) * g + b


def _gelu_tanh(x):
    c = math.sqrt(2.0 / math.pi)
    return 0.5 * x * (1.0 + jnp.tanh(c * (x + 0.044715 * x * x * x)))


# ----------------------------- fused Pallas kernel ---------------------------
def _siglip_vit_kernel(patches_ref, pw_ref, pb_ref, pos_ref,
                       ln1g_ref, ln1b_ref, wqkv_ref, bqkv_ref, wo_ref, bo_ref,
                       ln2g_ref, ln2b_ref, w1_ref, b1_ref, w2_ref, b2_ref,
                       lnf_g_ref, lnf_b_ref, o_ref,
                       *, num_heads, head_dim, eps, scale):
    l = pl.program_id(1)
    last = pl.num_programs(1) - 1

    # ---- layer-0 prologue: patch embedding + positional embedding ----------
    @pl.when(l == 0)
    def _():
        y = jnp.dot(patches_ref[...].astype(jnp.bfloat16), pw_ref[...],
                    preferred_element_type=jnp.float32)
        o_ref[...] = (y + pb_ref[...] + pos_ref[...]).astype(o_ref.dtype)

    x = o_ref[...].astype(jnp.float32)      # residual stream, resident across l
    D = x.shape[-1]

    # ---- self-attention block ----
    h = _ln(x, ln1g_ref[...], ln1b_ref[...], eps)
    qkv = jnp.dot(h.astype(jnp.bfloat16), wqkv_ref[...],
                  preferred_element_type=jnp.float32) + bqkv_ref[...]
    q, k, v = qkv[:, :D], qkv[:, D:2 * D], qkv[:, 2 * D:]

    head_outs = []
    for hh in range(num_heads):                       # static unroll, heads are
        sl = slice(hh * head_dim, (hh + 1) * head_dim)  # contiguous lane slices
        # trans-B dot: contract last dims, no in-kernel K transpose.
        s = jax.lax.dot_general(q[:, sl], k[:, sl], (((1,), (1,)), ((), ())),
                                preferred_element_type=jnp.float32) * scale
        s = s - jnp.max(s, axis=-1, keepdims=True)
        p = jnp.exp(s)
        p = p * pl.reciprocal(jnp.sum(p, axis=-1, keepdims=True), approx=True)
        head_outs.append(jnp.dot(p.astype(jnp.bfloat16),
                                 v[:, sl].astype(jnp.bfloat16),
                                 preferred_element_type=jnp.float32))
    attn = jnp.concatenate(head_outs, axis=-1)
    a = jnp.dot(attn.astype(jnp.bfloat16), wo_ref[...],
                preferred_element_type=jnp.float32) + bo_ref[...]
    x = x + a

    # ---- MLP block (tanh GELU) ----
    h = _ln(x, ln2g_ref[...], ln2b_ref[...], eps)
    y = jnp.dot(h.astype(jnp.bfloat16), w1_ref[...],
                preferred_element_type=jnp.float32) + b1_ref[...]
    y = _gelu_tanh(y)
    y = jnp.dot(y.astype(jnp.bfloat16), w2_ref[...],
                preferred_element_type=jnp.float32) + b2_ref[...]
    out = x + y

    @pl.when(l < last)
    def _():
        o_ref[...] = out.astype(o_ref.dtype)

    @pl.when(l == last)                     # post_layernorm fused into epilogue
    def _():
        o_ref[...] = _ln(out, lnf_g_ref[...], lnf_b_ref[...],
                         eps).astype(o_ref.dtype)


# ----------------------------- pallas_call wrapper ---------------------------
def siglip_vision_transformer(pp, pixel_values, cfg):
    patches = extract_patches(pixel_values, cfg.patch_size)     # [B, N, K]
    B, N, K = patches.shape
    D = cfg.hidden_size
    inter = cfg.intermediate_size
    L = cfg.num_hidden_layers
    heads = cfg.num_attention_heads
    hd = D // heads

    kern = functools.partial(_siglip_vit_kernel, num_heads=heads, head_dim=hd,
                             eps=cfg.layer_norm_eps, scale=hd ** -0.5)

    def rep(r, c):                           # replicated (never re-tiled)
        return pl.BlockSpec((r, c), lambda b, l: (0, 0))

    def per_layer(r, c):                     # stacked [L, r, c], indexed by l
        return pl.BlockSpec((None, r, c), lambda b, l: (l, 0, 0))

    return pl.pallas_call(
        kern,
        out_shape=jax.ShapeDtypeStruct((B, N, D), jnp.float32),
        grid=(B, L),
        in_specs=[
            pl.BlockSpec((None, N, K), lambda b, l: (b, 0, 0)),  # patches
            rep(K, D), rep(1, D),                                # patch w, b
            rep(N, D),                                           # pos table
            per_layer(1, D), per_layer(1, D),                    # ln1 g, b
            per_layer(D, 3 * D), per_layer(1, 3 * D),            # fused qkv w,b
            per_layer(D, D), per_layer(1, D),                    # o-proj w, b
            per_layer(1, D), per_layer(1, D),                    # ln2 g, b
            per_layer(D, inter), per_layer(1, inter),            # fc1 w, b
            per_layer(inter, D), per_layer(1, D),                # fc2 w, b
            rep(1, D), rep(1, D),                                # post-LN g, b
        ],
        out_specs=pl.BlockSpec((None, N, D), lambda b, l: (b, 0, 0)),
        compiler_params=pltpu.CompilerParams(
            dimension_semantics=("parallel", "arbitrary")),
    )(patches, pp["patch_w"], pp["patch_b"], pp["pos_emb"],
      pp["ln1_g"], pp["ln1_b"], pp["wqkv"], pp["bqkv"], pp["wo"], pp["bo"],
      pp["ln2_g"], pp["ln2_b"], pp["w1"], pp["b1"], pp["w2"], pp["b2"],
      pp["post_ln_g"], pp["post_ln_b"])


# ----------------------------- parameters ------------------------------------
def init_params(key, cfg):
    D, C, P = cfg.hidden_size, cfg.num_channels, cfg.patch_size
    inter = cfg.intermediate_size
    N = (cfg.image_size // P) ** 2
    keys = iter(jax.random.split(key, 64))

    def w(shape, scale=0.02):
        return jax.random.normal(next(keys), shape, jnp.float32) * scale

    params = {
        "patch_w": w((D, C, P, P)),                 # Conv2d weight layout
        "patch_b": jnp.zeros((D,), jnp.float32),
        "pos_emb": w((N, D)),
        "post_ln_g": jnp.ones((D,), jnp.float32),
        "post_ln_b": jnp.zeros((D,), jnp.float32),
        "layers": [],
    }
    for _ in range(cfg.num_hidden_layers):
        params["layers"].append({
            "ln1_g": jnp.ones((D,), jnp.float32), "ln1_b": jnp.zeros((D,), jnp.float32),
            "q_w": w((D, D)), "q_b": jnp.zeros((D,), jnp.float32),
            "k_w": w((D, D)), "k_b": jnp.zeros((D,), jnp.float32),
            "v_w": w((D, D)), "v_b": jnp.zeros((D,), jnp.float32),
            "o_w": w((D, D)), "o_b": jnp.zeros((D,), jnp.float32),
            "ln2_g": jnp.ones((D,), jnp.float32), "ln2_b": jnp.zeros((D,), jnp.float32),
            "fc1_w": w((D, inter)), "fc1_b": jnp.zeros((inter,), jnp.float32),
            "fc2_w": w((inter, D)), "fc2_b": jnp.zeros((D,), jnp.float32),
        })
    return params


def pack_params(params, cfg):
    """Kernel-ready params: per-layer tensors stacked along a leading L axis,
    bf16 matmul weights, 2-D (broadcastable) biases."""
    D, C, P = cfg.hidden_size, cfg.num_channels, cfg.patch_size
    inter = cfg.intermediate_size
    ls = params["layers"]

    def stk(fn):
        return jnp.stack([fn(lp) for lp in ls], axis=0)

    return {
        "patch_w": params["patch_w"].reshape(D, C * P * P).T.astype(jnp.bfloat16),
        "patch_b": params["patch_b"].reshape(1, D),
        "pos_emb": params["pos_emb"],
        "post_ln_g": params["post_ln_g"].reshape(1, D),
        "post_ln_b": params["post_ln_b"].reshape(1, D),
        "ln1_g": stk(lambda lp: lp["ln1_g"].reshape(1, D)),
        "ln1_b": stk(lambda lp: lp["ln1_b"].reshape(1, D)),
        "wqkv": stk(lambda lp: jnp.concatenate(
            [lp["q_w"], lp["k_w"], lp["v_w"]], axis=1)).astype(jnp.bfloat16),
        "bqkv": stk(lambda lp: jnp.concatenate(
            [lp["q_b"], lp["k_b"], lp["v_b"]]).reshape(1, 3 * D)),
        "wo": stk(lambda lp: lp["o_w"]).astype(jnp.bfloat16),
        "bo": stk(lambda lp: lp["o_b"].reshape(1, D)),
        "ln2_g": stk(lambda lp: lp["ln2_g"].reshape(1, D)),
        "ln2_b": stk(lambda lp: lp["ln2_b"].reshape(1, D)),
        "w1": stk(lambda lp: lp["fc1_w"]).astype(jnp.bfloat16),
        "b1": stk(lambda lp: lp["fc1_b"].reshape(1, inter)),
        "w2": stk(lambda lp: lp["fc2_w"]).astype(jnp.bfloat16),
        "b2": stk(lambda lp: lp["fc2_b"].reshape(1, D)),
    }


# ----------------------------- patch extraction -------------------------------
def extract_patches(pixel_values, P):
    """NCHW -> [B, N, C*P*P] with the same row/feature order as Conv2d."""
    B, C, H, W = pixel_values.shape
    nh, nw = H // P, W // P
    x = pixel_values.reshape(B, C, nh, P, nw, P)
    x = x.transpose(0, 2, 4, 1, 3, 5)               # B, nh, nw, C, ph, pw
    return x.reshape(B, nh * nw, C * P * P)


# ----------------------------- pure-JAX reference ----------------------------
def reference(params, pixel_values, cfg):
    B, C, H, W = pixel_values.shape
    P, D = cfg.patch_size, cfg.hidden_size
    heads = cfg.num_attention_heads
    d = D // heads
    patches = extract_patches(pixel_values, P)
    N = patches.shape[1]
    w = params["patch_w"].reshape(D, C * P * P).T
    h = (patches.reshape(B * N, -1) @ w + params["patch_b"]
         + jnp.tile(params["pos_emb"], (B, 1)))
    for lp in params["layers"]:
        res = h
        x = _ln(h, lp["ln1_g"], lp["ln1_b"], cfg.layer_norm_eps)
        q = (x @ lp["q_w"] + lp["q_b"]).reshape(B, N, heads, d).transpose(0, 2, 1, 3)
        k = (x @ lp["k_w"] + lp["k_b"]).reshape(B, N, heads, d).transpose(0, 2, 1, 3)
        v = (x @ lp["v_w"] + lp["v_b"]).reshape(B, N, heads, d).transpose(0, 2, 1, 3)
        s = jnp.einsum("bhqd,bhkd->bhqk", q, k) * (d ** -0.5)
        p = jax.nn.softmax(s, axis=-1)
        a = jnp.einsum("bhqk,bhkd->bhqd", p, v).transpose(0, 2, 1, 3).reshape(B * N, D)
        h = res + (a @ lp["o_w"] + lp["o_b"])
        res = h
        x = _ln(h, lp["ln2_g"], lp["ln2_b"], cfg.layer_norm_eps)
        x = _gelu_tanh(x @ lp["fc1_w"] + lp["fc1_b"])
        h = res + (x @ lp["fc2_w"] + lp["fc2_b"])
    h = _ln(h, params["post_ln_g"], params["post_ln_b"], cfg.layer_norm_eps)
    return h.reshape(B, N, D)


# ----------------------------- main -------------------------------------------
if __name__ == "__main__":
    cfg = SiglipVisionConfig()
    key = jax.random.PRNGKey(0)
    k_param, k_pix = jax.random.split(key)

    params = init_params(k_param, cfg)
    pixel_values = jax.random.normal(
        k_pix, (2, cfg.num_channels, cfg.image_size, cfg.image_size), jnp.float32)

    packed = pack_params(params, cfg)
    fwd = jax.jit(lambda pp, x: siglip_vision_transformer(pp, x, cfg))
    out = jax.block_until_ready(fwd(packed, pixel_values))

    N = (cfg.image_size // cfg.patch_size) ** 2
    assert out.shape == (2, N, cfg.hidden_size), out.shape
    assert bool(jnp.all(jnp.isfinite(out)))

    ref = jax.block_until_ready(reference(params, pixel_values, cfg))
    max_err = float(jnp.max(jnp.abs(out - ref)))
    assert jnp.allclose(out, ref, rtol=5e-2, atol=5e-2), max_err

    print("KERNEL_OK")
</pallas_src>

<mosaic_0001>
module attributes {stable_mosaic.version = 11 : i64} {
  func.func @_siglip_vit_kernel(%arg0: i32, %arg1: i32, %arg2: memref<1x16x48xf32, #tpu.memory_space<vmem>>, %arg3: memref<48x32xbf16, #tpu.memory_space<vmem>>, %arg4: memref<1x32xf32, #tpu.memory_space<vmem>>, %arg5: memref<16x32xf32, #tpu.memory_space<vmem>>, %arg6: memref<1x1x32xf32, #tpu.memory_space<vmem>>, %arg7: memref<1x1x32xf32, #tpu.memory_space<vmem>>, %arg8: memref<1x32x96xbf16, #tpu.memory_space<vmem>>, %arg9: memref<1x1x96xf32, #tpu.memory_space<vmem>>, %arg10: memref<1x32x32xbf16, #tpu.memory_space<vmem>>, %arg11: memref<1x1x32xf32, #tpu.memory_space<vmem>>, %arg12: memref<1x1x32xf32, #tpu.memory_space<vmem>>, %arg13: memref<1x1x32xf32, #tpu.memory_space<vmem>>, %arg14: memref<1x32x64xbf16, #tpu.memory_space<vmem>>, %arg15: memref<1x1x64xf32, #tpu.memory_space<vmem>>, %arg16: memref<1x64x32xbf16, #tpu.memory_space<vmem>>, %arg17: memref<1x1x32xf32, #tpu.memory_space<vmem>>, %arg18: memref<1x32xf32, #tpu.memory_space<vmem>>, %arg19: memref<1x32xf32, #tpu.memory_space<vmem>>, %arg20: memref<1x16x32xf32, #tpu.memory_space<vmem>>) attributes {dimension_semantics = [#tpu.dimension_semantics<parallel>, #tpu.dimension_semantics<arbitrary>], iteration_bounds = array<i64: 2, 2>, scalar_prefetch = 0 : i64, scratch_operands = 0 : i64, tpu.core_type = #tpu.core_type<tc>, window_params = [{transform_indices = @transform_0, window_bounds = array<i64: 1, 16, 48>}, {pipeline_mode = #tpu.pipeline_mode<synchronous>, transform_indices = @transform_1, window_bounds = array<i64: 48, 32>}, {pipeline_mode = #tpu.pipeline_mode<synchronous>, transform_indices = @transform_2, window_bounds = array<i64: 1, 32>}, {pipeline_mode = #tpu.pipeline_mode<synchronous>, transform_indices = @transform_3, window_bounds = array<i64: 16, 32>}, {transform_indices = @transform_4, window_bounds = array<i64: 1, 1, 32>}, {transform_indices = @transform_5, window_bounds = array<i64: 1, 1, 32>}, {transform_indices = @transform_6, window_bounds = array<i64: 1, 32, 96>}, {transform_indices = @transform_7, window_bounds = array<i64: 1, 1, 96>}, {transform_indices = @transform_8, window_bounds = array<i64: 1, 32, 32>}, {transform_indices = @transform_9, window_bounds = array<i64: 1, 1, 32>}, {transform_indices = @transform_10, window_bounds = array<i64: 1, 1, 32>}, {transform_indices = @transform_11, window_bounds = array<i64: 1, 1, 32>}, {transform_indices = @transform_12, window_bounds = array<i64: 1, 32, 64>}, {transform_indices = @transform_13, window_bounds = array<i64: 1, 1, 64>}, {transform_indices = @transform_14, window_bounds = array<i64: 1, 64, 32>}, {transform_indices = @transform_15, window_bounds = array<i64: 1, 1, 32>}, {pipeline_mode = #tpu.pipeline_mode<synchronous>, transform_indices = @transform_16, window_bounds = array<i64: 1, 32>}, {pipeline_mode = #tpu.pipeline_mode<synchronous>, transform_indices = @transform_17, window_bounds = array<i64: 1, 32>}, {transform_indices = @transform_18, window_bounds = array<i64: 1, 16, 32>}]} {
    %c0_i32 = arith.constant 0 : i32
    %0 = arith.cmpi eq, %arg1, %c0_i32 : i32
    %1 = arith.extui %0 : i1 to i32
    %c0_i32_0 = arith.constant 0 : i32
    %2 = arith.cmpi ne, %1, %c0_i32_0 : i32
    scf.if %2 {
      %c0_79 = arith.constant 0 : index
      %c0_80 = arith.constant 0 : index
      %c0_81 = arith.constant 0 : index
      %190 = vector.load %arg2[%c0_79, %c0_80, %c0_81] : memref<1x16x48xf32, #tpu.memory_space<vmem>>, vector<1x16x48xf32>
      %191 = vector.shape_cast %190 : vector<1x16x48xf32> to vector<16x48xf32>
      %192 = arith.truncf %191 : vector<16x48xf32> to vector<16x48xbf16>
      %c0_82 = arith.constant 0 : index
      %c0_83 = arith.constant 0 : index
      %193 = vector.load %arg3[%c0_82, %c0_83] : memref<48x32xbf16, #tpu.memory_space<vmem>>, vector<48x32xbf16>
      %cst_84 = arith.constant dense<0.000000e+00> : vector<16x32xf32>
      %194 = tpu.matmul %192, %193, %cst_84 {dimension_numbers = #tpu.dot_dimension_numbers<[1], [0], [0], [1], [0, 0, 1, 1], [], []>} : vector<16x48xbf16>, vector<48x32xbf16>, vector<16x32xf32> -> vector<16x32xf32>
      %c0_85 = arith.constant 0 : index
      %c0_86 = arith.constant 0 : index
      %195 = vector.load %arg4[%c0_85, %c0_86] : memref<1x32xf32, #tpu.memory_space<vmem>>, vector<1x32xf32>
      %196 = vector.broadcast %195 : vector<1x32xf32> to vector<16x32xf32>
      %197 = arith.addf %194, %196 : vector<16x32xf32>
      %c0_87 = arith.constant 0 : index
      %c0_88 = arith.constant 0 : index
      %198 = vector.load %arg5[%c0_87, %c0_88] : memref<16x32xf32, #tpu.memory_space<vmem>>, vector<16x32xf32>
      %199 = arith.addf %197, %198 : vector<16x32xf32>
      %c0_89 = arith.constant 0 : index
      %c0_90 = arith.constant 0 : index
      %c0_91 = arith.constant 0 : index
      %200 = vector.load %arg20[%c0_89, %c0_90, %c0_91] : memref<1x16x32xf32, #tpu.memory_space<vmem>>, vector<1x16x32xf32>
      %201 = vector.shape_cast %200 : vector<1x16x32xf32> to vector<16x32xf32>
      %202 = vector.shape_cast %199 : vector<16x32xf32> to vector<1x16x32xf32>
      tpu.vector_store %arg20[%c0_89, %c0_90, %c0_91], %202 {strides = array<i32>} : memref<1x16x32xf32, #tpu.memory_space<vmem>>, vector<1x16x32xf32>,
    } else {
    }
    %c0 = arith.constant 0 : index
    %c0_1 = arith.constant 0 : index
    %c0_2 = arith.constant 0 : index
    %3 = vector.load %arg20[%c0, %c0_1, %c0_2] : memref<1x16x32xf32, #tpu.memory_space<vmem>>, vector<1x16x32xf32>
    %4 = vector.shape_cast %3 : vector<1x16x32xf32> to vector<16x32xf32>
    %c0_3 = arith.constant 0 : index
    %c0_4 = arith.constant 0 : index
    %c0_5 = arith.constant 0 : index
    %5 = vector.load %arg6[%c0_3, %c0_4, %c0_5] : memref<1x1x32xf32, #tpu.memory_space<vmem>>, vector<1x1x32xf32>
    %6 = vector.shape_cast %5 : vector<1x1x32xf32> to vector<1x32xf32>
    %c0_6 = arith.constant 0 : index
    %c0_7 = arith.constant 0 : index
    %c0_8 = arith.constant 0 : index
    %7 = vector.load %arg7[%c0_6, %c0_7, %c0_8] : memref<1x1x32xf32, #tpu.memory_space<vmem>>, vector<1x1x32xf32>
    %8 = vector.shape_cast %7 : vector<1x1x32xf32> to vector<1x32xf32>
    %cst = arith.constant dense<0.000000e+00> : vector<16xf32>
    %9 = vector.multi_reduction <add>, %4, %cst [1] : vector<16x32xf32> to vector<16xf32>
    %10 = vector.shape_cast %9 : vector<16xf32> to vector<16x1xf32>
    %cst_9 = arith.constant 3.200000e+01 : f32
    %11 = vector.broadcast %cst_9 : f32 to vector<16x1xf32>
    %12 = arith.divf %10, %11 : vector<16x1xf32>
    %13 = vector.broadcast %12 : vector<16x1xf32> to vector<16x32xf32>
    %14 = arith.subf %4, %13 : vector<16x32xf32>
    %15 = arith.mulf %14, %14 : vector<16x32xf32>
    %cst_10 = arith.constant dense<0.000000e+00> : vector<16xf32>
    %16 = vector.multi_reduction <add>, %15, %cst_10 [1] : vector<16x32xf32> to vector<16xf32>
    %17 = vector.shape_cast %16 : vector<16xf32> to vector<16x1xf32>
    %cst_11 = arith.constant 3.200000e+01 : f32
    %18 = vector.broadcast %cst_11 : f32 to vector<16x1xf32>
    %19 = arith.divf %17, %18 : vector<16x1xf32>
    %20 = vector.broadcast %12 : vector<16x1xf32> to vector<16x32xf32>
    %21 = arith.subf %4, %20 : vector<16x32xf32>
    %cst_12 = arith.constant 9.99999997E-7 : f32
    %22 = vector.broadcast %cst_12 : f32 to vector<16x1xf32>
    %23 = arith.addf %19, %22 : vector<16x1xf32>
    %24 = math.rsqrt %23 : vector<16x1xf32>
    %25 = vector.broadcast %24 : vector<16x1xf32> to vector<16x32xf32>
    %26 = arith.mulf %21, %25 : vector<16x32xf32>
    %27 = vector.broadcast %6 : vector<1x32xf32> to vector<16x32xf32>
    %28 = arith.mulf %26, %27 : vector<16x32xf32>
    %29 = vector.broadcast %8 : vector<1x32xf32> to vector<16x32xf32>
    %30 = arith.addf %28, %29 : vector<16x32xf32>
    %31 = arith.truncf %30 : vector<16x32xf32> to vector<16x32xbf16>
    %c0_13 = arith.constant 0 : index
    %c0_14 = arith.constant 0 : index
    %c0_15 = arith.constant 0 : index
    %32 = vector.load %arg8[%c0_13, %c0_14, %c0_15] : memref<1x32x96xbf16, #tpu.memory_space<vmem>>, vector<1x32x96xbf16>
    %33 = vector.shape_cast %32 : vector<1x32x96xbf16> to vector<32x96xbf16>
    %cst_16 = arith.constant dense<0.000000e+00> : vector<16x96xf32>
    %34 = tpu.matmul %31, %33, %cst_16 {dimension_numbers = #tpu.dot_dimension_numbers<[1], [0], [0], [1], [0, 0, 1, 1], [], []>} : vector<16x32xbf16>, vector<32x96xbf16>, vector<16x96xf32> -> vector<16x96xf32>
    %c0_17 = arith.constant 0 : index
    %c0_18 = arith.constant 0 : index
    %c0_19 = arith.constant 0 : index
    %35 = vector.load %arg9[%c0_17, %c0_18, %c0_19] : memref<1x1x96xf32, #tpu.memory_space<vmem>>, vector<1x1x96xf32>
    %36 = vector.shape_cast %35 : vector<1x1x96xf32> to vector<1x96xf32>
    %37 = vector.broadcast %36 : vector<1x96xf32> to vector<16x96xf32>
    %38 = arith.addf %34, %37 : vector<16x96xf32>
    %39 = vector.extract_strided_slice %38 {offsets = [0, 0], sizes = [16, 32], strides = [1, 1]} : vector<16x96xf32> to vector<16x32xf32>
    %40 = vector.extract_strided_slice %38 {offsets = [0, 32], sizes = [16, 32], strides = [1, 1]} : vector<16x96xf32> to vector<16x32xf32>
    %41 = vector.extract_strided_slice %38 {offsets = [0, 64], sizes = [16, 32], strides = [1, 1]} : vector<16x96xf32> to vector<16x32xf32>
    %42 = vector.extract_strided_slice %39 {offsets = [0, 0], sizes = [16, 8], strides = [1, 1]} : vector<16x32xf32> to vector<16x8xf32>
    %43 = vector.extract_strided_slice %40 {offsets = [0, 0], sizes = [16, 8], strides = [1, 1]} : vector<16x32xf32> to vector<16x8xf32>
    %cst_20 = arith.constant dense<0.000000e+00> : vector<16x16xf32>
    %44 = tpu.matmul %42, %43, %cst_20 {dimension_numbers = #tpu.dot_dimension_numbers<[1], [1], [0], [0], [0, 0, 1, 0], [], []>} : vector<16x8xf32>, vector<16x8xf32>, vector<16x16xf32> -> vector<16x16xf32>
    %cst_21 = arith.constant 0.353553385 : f32
    %45 = vector.broadcast %cst_21 : f32 to vector<16x16xf32>
    %46 = arith.mulf %44, %45 : vector<16x16xf32>
    %cst_22 = arith.constant dense<0xFF800000> : vector<16xf32>
    %47 = vector.multi_reduction <maximumf>, %46, %cst_22 [1] : vector<16x16xf32> to vector<16xf32>
    %48 = vector.shape_cast %47 : vector<16xf32> to vector<16x1xf32>
    %49 = vector.broadcast %48 : vector<16x1xf32> to vector<16x16xf32>
    %50 = arith.subf %46, %49 : vector<16x16xf32>
    %51 = math.exp %50 : vector<16x16xf32>
    %cst_23 = arith.constant dense<0.000000e+00> : vector<16xf32>
    %52 = vector.multi_reduction <add>, %51, %cst_23 [1] : vector<16x16xf32> to vector<16xf32>
    %53 = vector.shape_cast %52 : vector<16xf32> to vector<16x1xf32>
    %54 = tpu.reciprocal %53 {approx = true} : vector<16x1xf32> -> vector<16x1xf32>
    %55 = vector.broadcast %54 : vector<16x1xf32> to vector<16x16xf32>
    %56 = arith.mulf %51, %55 : vector<16x16xf32>
    %57 = arith.truncf %56 : vector<16x16xf32> to vector<16x16xbf16>
    %58 = vector.extract_strided_slice %41 {offsets = [0, 0], sizes = [16, 8], strides = [1, 1]} : vector<16x32xf32> to vector<16x8xf32>
    %59 = arith.truncf %58 : vector<16x8xf32> to vector<16x8xbf16>
    %cst_24 = arith.constant dense<0.000000e+00> : vector<16x8xf32>
    %60 = tpu.matmul %57, %59, %cst_24 {dimension_numbers = #tpu.dot_dimension_numbers<[1], [0], [0], [1], [0, 0, 1, 1], [], []>} : vector<16x16xbf16>, vector<16x8xbf16>, vector<16x8xf32> -> vector<16x8xf32>
    %61 = vector.extract_strided_slice %39 {offsets = [0, 8], sizes = [16, 8], strides = [1, 1]} : vector<16x32xf32> to vector<16x8xf32>
    %62 = vector.extract_strided_slice %40 {offsets = [0, 8], sizes = [16, 8], strides = [1, 1]} : vector<16x32xf32> to vector<16x8xf32>
    %cst_25 = arith.constant dense<0.000000e+00> : vector<16x16xf32>
    %63 = tpu.matmul %61, %62, %cst_25 {dimension_numbers = #tpu.dot_dimension_numbers<[1], [1], [0], [0], [0, 0, 1, 0], [], []>} : vector<16x8xf32>, vector<16x8xf32>, vector<16x16xf32> -> vector<16x16xf32>
    %cst_26 = arith.constant 0.353553385 : f32
    %64 = vector.broadcast %cst_26 : f32 to vector<16x16xf32>
    %65 = arith.mulf %63, %64 : vector<16x16xf32>
    %cst_27 = arith.constant dense<0xFF800000> : vector<16xf32>
    %66 = vector.multi_reduction <maximumf>, %65, %cst_27 [1] : vector<16x16xf32> to vector<16xf32>
    %67 = vector.shape_cast %66 : vector<16xf32> to vector<16x1xf32>
    %68 = vector.broadcast %67 : vector<16x1xf32> to vector<16x16xf32>
    %69 = arith.subf %65, %68 : vector<16x16xf32>
    %70 = math.exp %69 : vector<16x16xf32>
    %cst_28 = arith.constant dense<0.000000e+00> : vector<16xf32>
    %71 = vector.multi_reduction <add>, %70, %cst_28 [1] : vector<16x16xf32> to vector<16xf32>
    %72 = vector.shape_cast %71 : vector<16xf32> to vector<16x1xf32>
    %73 = tpu.reciprocal %72 {approx = true} : vector<16x1xf32> -> vector<16x1xf32>
    %74 = vector.broadcast %73 : vector<16x1xf32> to vector<16x16xf32>
    %75 = arith.mulf %70, %74 : vector<16x16xf32>
    %76 = arith.truncf %75 : vector<16x16xf32> to vector<16x16xbf16>
    %77 = vector.extract_strided_slice %41 {offsets = [0, 8], sizes = [16, 8], strides = [1, 1]} : vector<16x32xf32> to vector<16x8xf32>
    %78 = arith.truncf %77 : vector<16x8xf32> to vector<16x8xbf16>
    %cst_29 = arith.constant dense<0.000000e+00> : vector<16x8xf32>
    %79 = tpu.matmul %76, %78, %cst_29 {dimension_numbers = #tpu.dot_dimension_numbers<[1], [0], [0], [1], [0, 0, 1, 1], [], []>} : vector<16x16xbf16>, vector<16x8xbf16>, vector<16x8xf32> -> vector<16x8xf32>
    %80 = vector.extract_strided_slice %39 {offsets = [0, 16], sizes = [16, 8], strides = [1, 1]} : vector<16x32xf32> to vector<16x8xf32>
    %81 = vector.extract_strided_slice %40 {offsets = [0, 16], sizes = [16, 8], strides = [1, 1]} : vector<16x32xf32> to vector<16x8xf32>
    %cst_30 = arith.constant dense<0.000000e+00> : vector<16x16xf32>
    %82 = tpu.matmul %80, %81, %cst_30 {dimension_numbers = #tpu.dot_dimension_numbers<[1], [1], [0], [0], [0, 0, 1, 0], [], []>} : vector<16x8xf32>, vector<16x8xf32>, vector<16x16xf32> -> vector<16x16xf32>
    %cst_31 = arith.constant 0.353553385 : f32
    %83 = vector.broadcast %cst_31 : f32 to vector<16x16xf32>
    %84 = arith.mulf %82, %83 : vector<16x16xf32>
    %cst_32 = arith.constant dense<0xFF800000> : vector<16xf32>
    %85 = vector.multi_reduction <maximumf>, %84, %cst_32 [1] : vector<16x16xf32> to vector<16xf32>
    %86 = vector.shape_cast %85 : vector<16xf32> to vector<16x1xf32>
    %87 = vector.broadcast %86 : vector<16x1xf32> to vector<16x16xf32>
    %88 = arith.subf %84, %87 : vector<16x16xf32>
    %89 = math.exp %88 : vector<16x16xf32>
    %cst_33 = arith.constant dense<0.000000e+00> : vector<16xf32>
    %90 = vector.multi_reduction <add>, %89, %cst_33 [1] : vector<16x16xf32> to vector<16xf32>
    %91 = vector.shape_cast %90 : vector<16xf32> to vector<16x1xf32>
    %92 = tpu.reciprocal %91 {approx = true} : vector<16x1xf32> -> vector<16x1xf32>
    %93 = vector.broadcast %92 : vector<16x1xf32> to vector<16x16xf32>
    %94 = arith.mulf %89, %93 : vector<16x16xf32>
    %95 = arith.truncf %94 : vector<16x16xf32> to vector<16x16xbf16>
    %96 = vector.extract_strided_slice %41 {offsets = [0, 16], sizes = [16, 8], strides = [1, 1]} : vector<16x32xf32> to vector<16x8xf32>
    %97 = arith.truncf %96 : vector<16x8xf32> to vector<16x8xbf16>
    %cst_34 = arith.constant dense<0.000000e+00> : vector<16x8xf32>
    %98 = tpu.matmul %95, %97, %cst_34 {dimension_numbers = #tpu.dot_dimension_numbers<[1], [0], [0], [1], [0, 0, 1, 1], [], []>} : vector<16x16xbf16>, vector<16x8xbf16>, vector<16x8xf32> -> vector<16x8xf32>
    %99 = vector.extract_strided_slice %39 {offsets = [0, 24], sizes = [16, 8], strides = [1, 1]} : vector<16x32xf32> to vector<16x8xf32>
    %100 = vector.extract_strided_slice %40 {offsets = [0, 24], sizes = [16, 8], strides = [1, 1]} : vector<16x32xf32> to vector<16x8xf32>
    %cst_35 = arith.constant dense<0.000000e+00> : vector<16x16xf32>
    %101 = tpu.matmul %99, %100, %cst_35 {dimension_numbers = #tpu.dot_dimension_numbers<[1], [1], [0], [0], [0, 0, 1, 0], [], []>} : vector<16x8xf32>, vector<16x8xf32>, vector<16x16xf32> -> vector<16x16xf32>
    %cst_36 = arith.constant 0.353553385 : f32
    %102 = vector.broadcast %cst_36 : f32 to vector<16x16xf32>
    %103 = arith.mulf %101, %102 : vector<16x16xf32>
    %cst_37 = arith.constant dense<0xFF800000> : vector<16xf32>
    %104 = vector.multi_reduction <maximumf>, %103, %cst_37 [1] : vector<16x16xf32> to vector<16xf32>
    %105 = vector.shape_cast %104 : vector<16xf32> to vector<16x1xf32>
    %106 = vector.broadcast %105 : vector<16x1xf32> to vector<16x16xf32>
    %107 = arith.subf %103, %106 : vector<16x16xf32>
    %108 = math.exp %107 : vector<16x16xf32>
    %cst_38 = arith.constant dense<0.000000e+00> : vector<16xf32>
    %109 = vector.multi_reduction <add>, %108, %cst_38 [1] : vector<16x16xf32> to vector<16xf32>
    %110 = vector.shape_cast %109 : vector<16xf32> to vector<16x1xf32>
    %111 = tpu.reciprocal %110 {approx = true} : vector<16x1xf32> -> vector<16x1xf32>
    %112 = vector.broadcast %111 : vector<16x1xf32> to vector<16x16xf32>
    %113 = arith.mulf %108, %112 : vector<16x16xf32>
    %114 = arith.truncf %113 : vector<16x16xf32> to vector<16x16xbf16>
    %115 = vector.extract_strided_slice %41 {offsets = [0, 24], sizes = [16, 8], strides = [1, 1]} : vector<16x32xf32> to vector<16x8xf32>
    %116 = arith.truncf %115 : vector<16x8xf32> to vector<16x8xbf16>
    %cst_39 = arith.constant dense<0.000000e+00> : vector<16x8xf32>
    %117 = tpu.matmul %114, %116, %cst_39 {dimension_numbers = #tpu.dot_dimension_numbers<[1], [0], [0], [1], [0, 0, 1, 1], [], []>} : vector<16x16xbf16>, vector<16x8xbf16>, vector<16x8xf32> -> vector<16x8xf32>
    %118 = tpu.concatenate %60, %79, %98, %117 in 1 : vector<16x8xf32>, vector<16x8xf32>, vector<16x8xf32>, vector<16x8xf32> -> vector<16x32xf32>
    %119 = arith.truncf %118 : vector<16x32xf32> to vector<16x32xbf16>
    %c0_40 = arith.constant 0 : index
    %c0_41 = arith.constant 0 : index
    %c0_42 = arith.constant 0 : index
    %120 = vector.load %arg10[%c0_40, %c0_41, %c0_42] : memref<1x32x32xbf16, #tpu.memory_space<vmem>>, vector<1x32x32xbf16>
    %121 = vector.shape_cast %120 : vector<1x32x32xbf16> to vector<32x32xbf16>
    %cst_43 = arith.constant dense<0.000000e+00> : vector<16x32xf32>
    %122 = tpu.matmul %119, %121, %cst_43 {dimension_numbers = #tpu.dot_dimension_numbers<[1], [0], [0], [1], [0, 0, 1, 1], [], []>} : vector<16x32xbf16>, vector<32x32xbf16>, vector<16x32xf32> -> vector<16x32xf32>
    %c0_44 = arith.constant 0 : index
    %c0_45 = arith.constant 0 : index
    %c0_46 = arith.constant 0 : index
    %123 = vector.load %arg11[%c0_44, %c0_45, %c0_46] : memref<1x1x32xf32, #tpu.memory_space<vmem>>, vector<1x1x32xf32>
    %124 = vector.shape_cast %123 : vector<1x1x32xf32> to vector<1x32xf32>
    %125 = vector.broadcast %124 : vector<1x32xf32> to vector<16x32xf32>
    %126 = arith.addf %122, %125 : vector<16x32xf32>
    %127 = arith.addf %4, %126 : vector<16x32xf32>
    %c0_47 = arith.constant 0 : index
    %c0_48 = arith.constant 0 : index
    %c0_49 = arith.constant 0 : index
    %128 = vector.load %arg12[%c0_47, %c0_48, %c0_49] : memref<1x1x32xf32, #tpu.memory_space<vmem>>, vector<1x1x32xf32>
    %129 = vector.shape_cast %128 : vector<1x1x32xf32> to vector<1x32xf32>
    %c0_50 = arith.constant 0 : index
    %c0_51 = arith.constant 0 : index
    %c0_52 = arith.constant 0 : index
    %130 = vector.load %arg13[%c0_50, %c0_51, %c0_52] : memref<1x1x32xf32, #tpu.memory_space<vmem>>, vector<1x1x32xf32>
    %131 = vector.shape_cast %130 : vector<1x1x32xf32> to vector<1x32xf32>
    %cst_53 = arith.constant dense<0.000000e+00> : vector<16xf32>
    %132 = vector.multi_reduction <add>, %127, %cst_53 [1] : vector<16x32xf32> to vector<16xf32>
    %133 = vector.shape_cast %132 : vector<16xf32> to vector<16x1xf32>
    %cst_54 = arith.constant 3.200000e+01 : f32
    %134 = vector.broadcast %cst_54 : f32 to vector<16x1xf32>
    %135 = arith.divf %133, %134 : vector<16x1xf32>
    %136 = vector.broadcast %135 : vector<16x1xf32> to vector<16x32xf32>
    %137 = arith.subf %127, %136 : vector<16x32xf32>
    %138 = arith.mulf %137, %137 : vector<16x32xf32>
    %cst_55 = arith.constant dense<0.000000e+00> : vector<16xf32>
    %139 = vector.multi_reduction <add>, %138, %cst_55 [1] : vector<16x32xf32> to vector<16xf32>
    %140 = vector.shape_cast %139 : vector<16xf32> to vector<16x1xf32>
    %cst_56 = arith.constant 3.200000e+01 : f32
    %141 = vector.broadcast %cst_56 : f32 to vector<16x1xf32>
    %142 = arith.divf %140, %141 : vector<16x1xf32>
    %143 = vector.broadcast %135 : vector<16x1xf32> to vector<16x32xf32>
    %144 = arith.subf %127, %143 : vector<16x32xf32>
    %cst_57 = arith.constant 9.99999997E-7 : f32
    %145 = vector.broadcast %cst_57 : f32 to vector<16x1xf32>
    %146 = arith.addf %142, %145 : vector<16x1xf32>
    %147 = math.rsqrt %146 : vector<16x1xf32>
    %148 = vector.broadcast %147 : vector<16x1xf32> to vector<16x32xf32>
    %149 = arith.mulf %144, %148 : vector<16x32xf32>
    %150 = vector.broadcast %129 : vector<1x32xf32> to vector<16x32xf32>
    %151 = arith.mulf %149, %150 : vector<16x32xf32>
    %152 = vector.broadcast %131 : vector<1x32xf32> to vector<16x32xf32>
    %153 = arith.addf %151, %152 : vector<16x32xf32>
    %154 = arith.truncf %153 : vector<16x32xf32> to vector<16x32xbf16>
    %c0_58 = arith.constant 0 : index
    %c0_59 = arith.constant 0 : index
    %c0_60 = arith.constant 0 : index
    %155 = vector.load %arg14[%c0_58, %c0_59, %c0_60] : memref<1x32x64xbf16, #tpu.memory_space<vmem>>, vector<1x32x64xbf16>
    %156 = vector.shape_cast %155 : vector<1x32x64xbf16> to vector<32x64xbf16>
    %cst_61 = arith.constant dense<0.000000e+00> : vector<16x64xf32>
    %157 = tpu.matmul %154, %156, %cst_61 {dimension_numbers = #tpu.dot_dimension_numbers<[1], [0], [0], [1], [0, 0, 1, 1], [], []>} : vector<16x32xbf16>, vector<32x64xbf16>, vector<16x64xf32> -> vector<16x64xf32>
    %c0_62 = arith.constant 0 : index
    %c0_63 = arith.constant 0 : index
    %c0_64 = arith.constant 0 : index
    %158 = vector.load %arg15[%c0_62, %c0_63, %c0_64] : memref<1x1x64xf32, #tpu.memory_space<vmem>>, vector<1x1x64xf32>
    %159 = vector.shape_cast %158 : vector<1x1x64xf32> to vector<1x64xf32>
    %160 = vector.broadcast %159 : vector<1x64xf32> to vector<16x64xf32>
    %161 = arith.addf %157, %160 : vector<16x64xf32>
    %cst_65 = arith.constant 5.000000e-01 : f32
    %162 = vector.broadcast %cst_65 : f32 to vector<16x64xf32>
    %163 = arith.mulf %162, %161 : vector<16x64xf32>
    %cst_66 = arith.constant 4.471500e-02 : f32
    %164 = vector.broadcast %cst_66 : f32 to vector<16x64xf32>
    %165 = arith.mulf %164, %161 : vector<16x64xf32>
    %166 = arith.mulf %165, %161 : vector<16x64xf32>
    %167 = arith.mulf %166, %161 : vector<16x64xf32>
    %168 = arith.addf %161, %167 : vector<16x64xf32>
    %cst_67 = arith.constant 0.797884583 : f32
    %169 = vector.broadcast %cst_67 : f32 to vector<16x64xf32>
    %170 = arith.mulf %169, %168 : vector<16x64xf32>
    %171 = math.tanh %170 : vector<16x64xf32>
    %cst_68 = arith.constant 1.000000e+00 : f32
    %172 = vector.broadcast %cst_68 : f32 to vector<16x64xf32>
    %173 = arith.addf %172, %171 : vector<16x64xf32>
    %174 = arith.mulf %163, %173 : vector<16x64xf32>
    %175 = arith.truncf %174 : vector<16x64xf32> to vector<16x64xbf16>
    %c0_69 = arith.constant 0 : index
    %c0_70 = arith.constant 0 : index
    %c0_71 = arith.constant 0 : index
    %176 = vector.load %arg16[%c0_69, %c0_70, %c0_71] : memref<1x64x32xbf16, #tpu.memory_space<vmem>>, vector<1x64x32xbf16>
    %177 = vector.shape_cast %176 : vector<1x64x32xbf16> to vector<64x32xbf16>
    %cst_72 = arith.constant dense<0.000000e+00> : vector<16x32xf32>
    %178 = tpu.matmul %175, %177, %cst_72 {dimension_numbers = #tpu.dot_dimension_numbers<[1], [0], [0], [1], [0, 0, 1, 1], [], []>} : vector<16x64xbf16>, vector<64x32xbf16>, vector<16x32xf32> -> vector<16x32xf32>
    %c0_73 = arith.constant 0 : index
    %c0_74 = arith.constant 0 : index
    %c0_75 = arith.constant 0 : index
    %179 = vector.load %arg17[%c0_73, %c0_74, %c0_75] : memref<1x1x32xf32, #tpu.memory_space<vmem>>, vector<1x1x32xf32>
    %180 = vector.shape_cast %179 : vector<1x1x32xf32> to vector<1x32xf32>
    %181 = vector.broadcast %180 : vector<1x32xf32> to vector<16x32xf32>
    %182 = arith.addf %178, %181 : vector<16x32xf32>
    %183 = arith.addf %127, %182 : vector<16x32xf32>
    %c1_i32 = arith.constant 1 : i32
    %184 = arith.cmpi slt, %arg1, %c1_i32 : i32
    %185 = arith.extui %184 : i1 to i32
    %c0_i32_76 = arith.constant 0 : i32
    %186 = arith.cmpi ne, %185, %c0_i32_76 : i32
    scf.if %186 {
      %c0_79 = arith.constant 0 : index
      %c0_80 = arith.constant 0 : index
      %c0_81 = arith.constant 0 : index
      %190 = vector.load %arg20[%c0_79, %c0_80, %c0_81] : memref<1x16x32xf32, #tpu.memory_space<vmem>>, vector<1x16x32xf32>
      %191 = vector.shape_cast %190 : vector<1x16x32xf32> to vector<16x32xf32>
      %192 = vector.shape_cast %183 : vector<16x32xf32> to vector<1x16x32xf32>
      tpu.vector_store %arg20[%c0_79, %c0_80, %c0_81], %192 {strides = array<i32>} : memref<1x16x32xf32, #tpu.memory_space<vmem>>, vector<1x16x32xf32>,
    } else {
    }
    %c1_i32_77 = arith.constant 1 : i32
    %187 = arith.cmpi eq, %arg1, %c1_i32_77 : i32
    %188 = arith.extui %187 : i1 to i32
    %c0_i32_78 = arith.constant 0 : i32
    %189 = arith.cmpi ne, %188, %c0_i32_78 : i32
    scf.if %189 {
      %c0_79 = arith.constant 0 : index
      %c0_80 = arith.constant 0 : index
      %190 = vector.load %arg18[%c0_79, %c0_80] : memref<1x32xf32, #tpu.memory_space<vmem>>, vector<1x32xf32>
      %c0_81 = arith.constant 0 : index
      %c0_82 = arith.constant 0 : index
      %191 = vector.load %arg19[%c0_81, %c0_82] : memref<1x32xf32, #tpu.memory_space<vmem>>, vector<1x32xf32>
      %cst_83 = arith.constant dense<0.000000e+00> : vector<16xf32>
      %192 = vector.multi_reduction <add>, %183, %cst_83 [1] : vector<16x32xf32> to vector<16xf32>
      %193 = vector.shape_cast %192 : vector<16xf32> to vector<16x1xf32>
      %cst_84 = arith.constant 3.200000e+01 : f32
      %194 = vector.broadcast %cst_84 : f32 to vector<16x1xf32>
      %195 = arith.divf %193, %194 : vector<16x1xf32>
      %196 = vector.broadcast %195 : vector<16x1xf32> to vector<16x32xf32>
      %197 = arith.subf %183, %196 : vector<16x32xf32>
      %198 = arith.mulf %197, %197 : vector<16x32xf32>
      %cst_85 = arith.constant dense<0.000000e+00> : vector<16xf32>
      %199 = vector.multi_reduction <add>, %198, %cst_85 [1] : vector<16x32xf32> to vector<16xf32>
      %200 = vector.shape_cast %199 : vector<16xf32> to vector<16x1xf32>
      %cst_86 = arith.constant 3.200000e+01 : f32
      %201 = vector.broadcast %cst_86 : f32 to vector<16x1xf32>
      %202 = arith.divf %200, %201 : vector<16x1xf32>
      %203 = vector.broadcast %195 : vector<16x1xf32> to vector<16x32xf32>
      %204 = arith.subf %183, %203 : vector<16x32xf32>
      %cst_87 = arith.constant 9.99999997E-7 : f32
      %205 = vector.broadcast %cst_87 : f32 to vector<16x1xf32>
      %206 = arith.addf %202, %205 : vector<16x1xf32>
      %207 = math.rsqrt %206 : vector<16x1xf32>
      %208 = vector.broadcast %207 : vector<16x1xf32> to vector<16x32xf32>
      %209 = arith.mulf %204, %208 : vector<16x32xf32>
      %210 = vector.broadcast %190 : vector<1x32xf32> to vector<16x32xf32>
      %211 = arith.mulf %209, %210 : vector<16x32xf32>
      %212 = vector.broadcast %191 : vector<1x32xf32> to vector<16x32xf32>
      %213 = arith.addf %211, %212 : vector<16x32xf32>
      %c0_88 = arith.constant 0 : index
      %c0_89 = arith.constant 0 : index
      %c0_90 = arith.constant 0 : index
      %214 = vector.load %arg20[%c0_88, %c0_89, %c0_90] : memref<1x16x32xf32, #tpu.memory_space<vmem>>, vector<1x16x32xf32>
      %215 = vector.shape_cast %214 : vector<1x16x32xf32> to vector<16x32xf32>
      %216 = vector.shape_cast %213 : vector<16x32xf32> to vector<1x16x32xf32>
      tpu.vector_store %arg20[%c0_88, %c0_89, %c0_90], %216 {strides = array<i32>} : memref<1x16x32xf32, #tpu.memory_space<vmem>>, vector<1x16x32xf32>,
    } else {
    }
    return
  }
  func.func @transform_0(%arg0: i32, %arg1: i32) -> (i32, i32, i32) {
    %c0_i32 = arith.constant 0 : i32
    %c0_i32_0 = arith.constant 0 : i32
    %c0_i32_1 = arith.constant 0 : i32
    return %arg0, %c0_i32, %c0_i32_0 : i32, i32, i32
  }
  func.func @transform_1(%arg0: i32, %arg1: i32) -> (i32, i32) {
    %c0_i32 = arith.constant 0 : i32
    %c0_i32_0 = arith.constant 0 : i32
    %c0_i32_1 = arith.constant 0 : i32
    return %c0_i32, %c0_i32_0 : i32, i32
  }
  func.func @transform_2(%arg0: i32, %arg1: i32) -> (i32, i32) {
    %c0_i32 = arith.constant 0 : i32
    %c0_i32_0 = arith.constant 0 : i32
    %c0_i32_1 = arith.constant 0 : i32
    return %c0_i32, %c0_i32_0 : i32, i32
  }
  func.func @transform_3(%arg0: i32, %arg1: i32) -> (i32, i32) {
    %c0_i32 = arith.constant 0 : i32
    %c0_i32_0 = arith.constant 0 : i32
    %c0_i32_1 = arith.constant 0 : i32
    return %c0_i32, %c0_i32_0 : i32, i32
  }
  func.func @transform_4(%arg0: i32, %arg1: i32) -> (i32, i32, i32) {
    %c0_i32 = arith.constant 0 : i32
    %c0_i32_0 = arith.constant 0 : i32
    %c0_i32_1 = arith.constant 0 : i32
    return %arg1, %c0_i32, %c0_i32_0 : i32, i32, i32
  }
  func.func @transform_5(%arg0: i32, %arg1: i32) -> (i32, i32, i32) {
    %c0_i32 = arith.constant 0 : i32
    %c0_i32_0 = arith.constant 0 : i32
    %c0_i32_1 = arith.constant 0 : i32
    return %arg1, %c0_i32, %c0_i32_0 : i32, i32, i32
  }
  func.func @transform_6(%arg0: i32, %arg1: i32) -> (i32, i32, i32) {
    %c0_i32 = arith.constant 0 : i32
    %c0_i32_0 = arith.constant 0 : i32
    %c0_i32_1 = arith.constant 0 : i32
    return %arg1, %c0_i32, %c0_i32_0 : i32, i32, i32
  }
  func.func @transform_7(%arg0: i32, %arg1: i32) -> (i32, i32, i32) {
    %c0_i32 = arith.constant 0 : i32
    %c0_i32_0 = arith.constant 0 : i32
    %c0_i32_1 = arith.constant 0 : i32
    return %arg1, %c0_i32, %c0_i32_0 : i32, i32, i32
  }
  func.func @transform_8(%arg0: i32, %arg1: i32) -> (i32, i32, i32) {
    %c0_i32 = arith.constant 0 : i32
    %c0_i32_0 = arith.constant 0 : i32
    %c0_i32_1 = arith.constant 0 : i32
    return %arg1, %c0_i32, %c0_i32_0 : i32, i32, i32
  }
  func.func @transform_9(%arg0: i32, %arg1: i32) -> (i32, i32, i32) {
    %c0_i32 = arith.constant 0 : i32
    %c0_i32_0 = arith.constant 0 : i32
    %c0_i32_1 = arith.constant 0 : i32
    return %arg1, %c0_i32, %c0_i32_0 : i32, i32, i32
  }
  func.func @transform_10(%arg0: i32, %arg1: i32) -> (i32, i32, i32) {
    %c0_i32 = arith.constant 0 : i32
    %c0_i32_0 = arith.constant 0 : i32
    %c0_i32_1 = arith.constant 0 : i32
    return %arg1, %c0_i32, %c0_i32_0 : i32, i32, i32
  }
  func.func @transform_11(%arg0: i32, %arg1: i32) -> (i32, i32, i32) {
    %c0_i32 = arith.constant 0 : i32
    %c0_i32_0 = arith.constant 0 : i32
    %c0_i32_1 = arith.constant 0 : i32
    return %arg1, %c0_i32, %c0_i32_0 : i32, i32, i32
  }
  func.func @transform_12(%arg0: i32, %arg1: i32) -> (i32, i32, i32) {
    %c0_i32 = arith.constant 0 : i32
    %c0_i32_0 = arith.constant 0 : i32
    %c0_i32_1 = arith.constant 0 : i32
    return %arg1, %c0_i32, %c0_i32_0 : i32, i32, i32
  }
  func.func @transform_13(%arg0: i32, %arg1: i32) -> (i32, i32, i32) {
    %c0_i32 = arith.constant 0 : i32
    %c0_i32_0 = arith.constant 0 : i32
    %c0_i32_1 = arith.constant 0 : i32
    return %arg1, %c0_i32, %c0_i32_0 : i32, i32, i32
  }
  func.func @transform_14(%arg0: i32, %arg1: i32) -> (i32, i32, i32) {
    %c0_i32 = arith.constant 0 : i32
    %c0_i32_0 = arith.constant 0 : i32
    %c0_i32_1 = arith.constant 0 : i32
    return %arg1, %c0_i32, %c0_i32_0 : i32, i32, i32
  }
  func.func @transform_15(%arg0: i32, %arg1: i32) -> (i32, i32, i32) {
    %c0_i32 = arith.constant 0 : i32
    %c0_i32_0 = arith.constant 0 : i32
    %c0_i32_1 = arith.constant 0 : i32
    return %arg1, %c0_i32, %c0_i32_0 : i32, i32, i32
  }
  func.func @transform_16(%arg0: i32, %arg1: i32) -> (i32, i32) {
    %c0_i32 = arith.constant 0 : i32
    %c0_i32_0 = arith.constant 0 : i32
    %c0_i32_1 = arith.constant 0 : i32
    return %c0_i32, %c0_i32_0 : i32, i32
  }
  func.func @transform_17(%arg0: i32, %arg1: i32) -> (i32, i32) {
    %c0_i32 = arith.constant 0 : i32
    %c0_i32_0 = arith.constant 0 : i32
    %c0_i32_1 = arith.constant 0 : i32
    return %c0_i32, %c0_i32_0 : i32, i32
  }
  func.func @transform_18(%arg0: i32, %arg1: i32) -> (i32, i32, i32) {
    %c0_i32 = arith.constant 0 : i32
    %c0_i32_0 = arith.constant 0 : i32
    %c0_i32_1 = arith.constant 0 : i32
    return %arg0, %c0_i32, %c0_i32_0 : i32, i32, i32
  }
}

</mosaic_0001>

<llo_original>
// kernel: _lambda_.1
$region0: #{_lambda_.1}
  #allocation0 [shape = 'u32[]', space=smem, size = 0x4, offset = 0x4, fixed_abs, tag = 'smem constant byte address 0x4 - core index']
  #allocation1 [shape = 'u32[144,128]{1,0:T(1,128)}', space=vmem, size = 0x12000, scoped, tag = 'internal scratch']
  %s0 = inlined_call_operand.vmem [shape: f32[2,16,48], index: 0, kind: input, shape index: {}]
  %s1 = inlined_call_operand.vmem [shape: bf16[48,32], index: 1, kind: input, shape index: {}]
  %s2 = inlined_call_operand.vmem [shape: f32[1,32], index: 2, kind: input, shape index: {}]
  %s3 = inlined_call_operand.vmem [shape: f32[16,32], index: 3, kind: input, shape index: {}]
  %s4 = inlined_call_operand.vmem [shape: f32[2,1,32], index: 4, kind: input, shape index: {}]
  %s5 = inlined_call_operand.vmem [shape: f32[2,1,32], index: 5, kind: input, shape index: {}]
  %s6 = inlined_call_operand.vmem [shape: bf16[2,32,96], index: 6, kind: input, shape index: {}]
  %s7 = inlined_call_operand.vmem [shape: f32[2,1,96], index: 7, kind: input, shape index: {}]
  %s8 = inlined_call_operand.vmem [shape: bf16[2,32,32], index: 8, kind: input, shape index: {}]
  %s9 = inlined_call_operand.vmem [shape: f32[2,1,32], index: 9, kind: input, shape index: {}]
  %s10 = inlined_call_operand.vmem [shape: f32[2,1,32], index: 10, kind: input, shape index: {}]
  %s11 = inlined_call_operand.vmem [shape: f32[2,1,32], index: 11, kind: input, shape index: {}]
  %s12 = inlined_call_operand.vmem [shape: bf16[2,32,64], index: 12, kind: input, shape index: {}]
  %s13 = inlined_call_operand.vmem [shape: f32[2,1,64], index: 13, kind: input, shape index: {}]
  %s14 = inlined_call_operand.vmem [shape: bf16[2,64,32], index: 14, kind: input, shape index: {}]
  %s15 = inlined_call_operand.vmem [shape: f32[2,1,32], index: 15, kind: input, shape index: {}]
  %s16 = inlined_call_operand.vmem [shape: f32[1,32], index: 16, kind: input, shape index: {}]
  %s17 = inlined_call_operand.vmem [shape: f32[1,32], index: 17, kind: input, shape index: {}]
  %s18 = inlined_call_operand.hbm [shape: f32[2,16,32], index: 18, kind: output, shape index: {}]
  %s19 = sld [smem:[#allocation0]]
  $region117: #{_lambda_.1} parent=0
    _
  %s21 = ssub.s32 1, %s19
  %s22 = scalar_select 0, %s21, %s19
  $region1: #{_lambda_.1} parent=0
    #allocation2 [shape = 'u8[16384]{0}', space=vmem, size = 0x4000, scoped, tag = 'output window, operand 0']
    #allocation3 [shape = 's32[2]{0}', space=sflag, size = 0x8, scoped, tag = 'scoped memory for _lambda_.1']
    %23 = vsyncpa [#allocation3], 0
    %s24 = scalar_lea.sflag [#allocation3], 1
    %25 = vsyncpa %s24, 0
    loop: start=0, step=1, limit=6
    $region2: #{_lambda_.1} parent=1 // loop_pre_header
      _
    $region3: #{_lambda_.1} parent=1 // loop_header
      %s27 = sphi 0, %s31
      %p28 = scmp.ge.s32.totalorder %s27, 6
      %s34 = sphi 0, %s46
      %s35 = sphi 0, %s42
      %s36 = sphi 0, %s34
      %s37 = sphi 0, %s35
      %s38 = sphi 0, %s36
      %s39 = sphi 0, %s37
      %s49 = sphi 0, %s51
      %s52 = sphi 0, %s49
      %s53 = sphi 0, %s52
      %s69 = sphi 0, %s53
      %s73 = sphi 0, %s73
      %s75 = sphi 0, %s73
      %s76 = sphi 0, %s75
      %s90 = sphi 0, %s76
      %s94 = sphi 0, %s94
      %s96 = sphi 0, %s94
      %s97 = sphi 0, %s96
      %s111 = sphi 0, %s97
      %s115 = sphi 0, %s115
      %s117 = sphi 0, %s115
      %s118 = sphi 0, %s117
      %s132 = sphi 0, %s118
      %s138 = sphi 0, %s140
      %s141 = sphi 0, %s138
      %s142 = sphi 0, %s141
      %s158 = sphi 0, %s142
      %s164 = sphi 0, %s166
      %s167 = sphi 0, %s164
      %s168 = sphi 0, %s167
      %s184 = sphi 0, %s168
      %s190 = sphi 0, %s192
      %s193 = sphi 0, %s190
      %s194 = sphi 0, %s193
      %s210 = sphi 0, %s194
      %s216 = sphi 0, %s218
      %s219 = sphi 0, %s216
      %s220 = sphi 0, %s219
      %s236 = sphi 0, %s220
      %s242 = sphi 0, %s244
      %s245 = sphi 0, %s242
      %s246 = sphi 0, %s245
      %s262 = sphi 0, %s246
      %s268 = sphi 0, %s270
      %s271 = sphi 0, %s268
      %s272 = sphi 0, %s271
      %s288 = sphi 0, %s272
      %s294 = sphi 0, %s296
      %s297 = sphi 0, %s294
      %s298 = sphi 0, %s297
      %s314 = sphi 0, %s298
      %s320 = sphi 0, %s322
      %s323 = sphi 0, %s320
      %s324 = sphi 0, %s323
      %s340 = sphi 0, %s324
      %s346 = sphi 0, %s348
      %s349 = sphi 0, %s346
      %s350 = sphi 0, %s349
      %s366 = sphi 0, %s350
      %s372 = sphi 0, %s374
      %s375 = sphi 0, %s372
      %s376 = sphi 0, %s375
      %s392 = sphi 0, %s376
      %s398 = sphi 0, %s400
      %s401 = sphi 0, %s398
      %s402 = sphi 0, %s401
      %s418 = sphi 0, %s402
      %s424 = sphi 0, %s426
      %s427 = sphi 0, %s424
      %s428 = sphi 0, %s427
      %s444 = sphi 0, %s428
      %s448 = sphi 0, %s448
      %s450 = sphi 0, %s448
      %s451 = sphi 0, %s450
      %s465 = sphi 0, %s451
      %s469 = sphi 0, %s469
      %s471 = sphi 0, %s469
      %s472 = sphi 0, %s471
      %s486 = sphi 0, %s472
      %s492 = sphi 0, %s494
      %s495 = sphi 0, %s492
      %s496 = sphi 0, %s495
      %s512 = sphi 0, %s496
    $region4: #{_lambda_.1} parent=1 // loop_header_branch
      %30 = sbr.rel (%p28) target = $region8
    $region5: #{_lambda_.1} parent=1 // loop_body
      %s32 = ssub.s32 %s27, 1
      %s33 = ssub.s32 %s27, 2
      %s40 = sadd.s32 1, %s35
      %p41 = scmp.ge.s32.totalorder %s40, 2
      %s42 = scalar_select %p41, 0, %s40
      %s43 = sadd.s32 1, %s34
      %s44 = scalar_select %p41, %s43, %s34
      %p45 = scmp.ge.s32.totalorder %s44, 2
      %s46 = scalar_select %p45, 0, %s44
      %s47 = ssub.s32 %s34, %s46
      %p48 = scmp.eq.s32.totalorder %s47, 0
      %s50 = sadd.s32 %s49, 1
      %s51 = scalar_select %p48, %s49, %s50
      %p54 = pneg %p48
      %p55 = scmp.eq.s32.totalorder %s27, 3
      %p56 = por %p54, %p55
      %p57 = scmp.ne.s32.totalorder %s49, %s52
      %p58 = scmp.eq.s32.totalorder %s27, 0
      %p59 = por %p57, %p58
      %p60 = scmp.ne.s32.totalorder %s49, %s52
      %p61 = scmp.eq.s32.totalorder %s32, 3
      %p62 = por %p60, %p61
      %p63 = scmp.ne.s32.totalorder %s52, %s53
      %p64 = scmp.eq.s32.totalorder %s32, 0
      %p65 = por %p63, %p64
      %p66 = scmp.ne.s32.totalorder %s52, %s53
      %p67 = scmp.eq.s32.totalorder %s33, 3
      %p68 = por %p66, %p67
      %p70 = scmp.ne.s32.totalorder %s53, %s69
      %p71 = scmp.eq.s32.totalorder %s33, 0
      %p72 = por %p70, %p71
      %s74 = sadd.s32 %s73, 1
      %p77 = scmp.eq.s32.totalorder %s27, 3
      %p78 = scmp.ne.s32.totalorder %s73, %s75
      %p79 = scmp.eq.s32.totalorder %s27, 0
      %p80 = por %p78, %p79
      %p81 = scmp.ne.s32.totalorder %s73, %s75
      %p82 = scmp.eq.s32.totalorder %s32, 3
      %p83 = por %p81, %p82
      %p84 = scmp.ne.s32.totalorder %s75, %s76
      %p85 = scmp.eq.s32.totalorder %s32, 0
      %p86 = por %p84, %p85
      %p87 = scmp.ne.s32.totalorder %s75, %s76
      %p88 = scmp.eq.s32.totalorder %s33, 3
      %p89 = por %p87, %p88
      %p91 = scmp.ne.s32.totalorder %s76, %s90
      %p92 = scmp.eq.s32.totalorder %s33, 0
      %p93 = por %p91, %p92
      %s95 = sadd.s32 %s94, 1
      %p98 = scmp.eq.s32.totalorder %s27, 3
      %p99 = scmp.ne.s32.totalorder %s94, %s96
      %p100 = scmp.eq.s32.totalorder %s27, 0
      %p101 = por %p99, %p100
      %p102 = scmp.ne.s32.totalorder %s94, %s96
      %p103 = scmp.eq.s32.totalorder %s32, 3
      %p104 = por %p102, %p103
      %p105 = scmp.ne.s32.totalorder %s96, %s97
      %p106 = scmp.eq.s32.totalorder %s32, 0
      %p107 = por %p105, %p106
      %p108 = scmp.ne.s32.totalorder %s96, %s97
      %p109 = scmp.eq.s32.totalorder %s33, 3
      %p110 = por %p108, %p109
      %p112 = scmp.ne.s32.totalorder %s97, %s111
      %p113 = scmp.eq.s32.totalorder %s33, 0
      %p114 = por %p112, %p113
      %s116 = sadd.s32 %s115, 1
      %p119 = scmp.eq.s32.totalorder %s27, 3
      %p120 = scmp.ne.s32.totalorder %s115, %s117
      %p121 = scmp.eq.s32.totalorder %s27, 0
      %p122 = por %p120, %p121
      %p123 = scmp.ne.s32.totalorder %s115, %s117
      %p124 = scmp.eq.s32.totalorder %s32, 3
      %p125 = por %p123, %p124
      %p126 = scmp.ne.s32.totalorder %s117, %s118
      %p127 = scmp.eq.s32.totalorder %s32, 0
      %p128 = por %p126, %p127
      %p129 = scmp.ne.s32.totalorder %s117, %s118
      %p130 = scmp.eq.s32.totalorder %s33, 3
      %p131 = por %p129, %p130
      %p133 = scmp.ne.s32.totalorder %s118, %s132
      %p134 = scmp.eq.s32.totalorder %s33, 0
      %p135 = por %p133, %p134
      %s136 = ssub.s32 %s35, %s42
      %p137 = scmp.eq.s32.totalorder %s136, 0
      %s139 = sadd.s32 %s138, 1
      %s140 = scalar_select %p137, %s138, %s139
      %p143 = pneg %p137
      %p144 = scmp.eq.s32.totalorder %s27, 3
      %p145 = por %p143, %p144
      %p146 = scmp.ne.s32.totalorder %s138, %s141
      %p147 = scmp.eq.s32.totalorder %s27, 0
      %p148 = por %p146, %p147
      %p149 = scmp.ne.s32.totalorder %s138, %s141
      %p150 = scmp.eq.s32.totalorder %s32, 3
      %p151 = por %p149, %p150
      %p152 = scmp.ne.s32.totalorder %s141, %s142
      %p153 = scmp.eq.s32.totalorder %s32, 0
      %p154 = por %p152, %p153
      %p155 = scmp.ne.s32.totalorder %s141, %s142
      %p156 = scmp.eq.s32.totalorder %s33, 3
      %p157 = por %p155, %p156
      %p159 = scmp.ne.s32.totalorder %s142, %s158
      %p160 = scmp.eq.s32.totalorder %s33, 0
      %p161 = por %p159, %p160
      %s162 = ssub.s32 %s35, %s42
      %p163 = scmp.eq.s32.totalorder %s162, 0
      %s165 = sadd.s32 %s164, 1
      %s166 = scalar_select %p163, %s164, %s165
      %p169 = pneg %p163
      %p170 = scmp.eq.s32.totalorder %s27, 3
      %p171 = por %p169, %p170
      %p172 = scmp.ne.s32.totalorder %s164, %s167
      %p173 = scmp.eq.s32.totalorder %s27, 0
      %p174 = por %p172, %p173
      %p175 = scmp.ne.s32.totalorder %s164, %s167
      %p176 = scmp.eq.s32.totalorder %s32, 3
      %p177 = por %p175, %p176
      %p178 = scmp.ne.s32.totalorder %s167, %s168
      %p179 = scmp.eq.s32.totalorder %s32, 0
      %p180 = por %p178, %p179
      %p181 = scmp.ne.s32.totalorder %s167, %s168
      %p182 = scmp.eq.s32.totalorder %s33, 3
      %p183 = por %p181, %p182
      %p185 = scmp.ne.s32.totalorder %s168, %s184
      %p186 = scmp.eq.s32.totalorder %s33, 0
      %p187 = por %p185, %p186
      %s188 = ssub.s32 %s35, %s42
      %p189 = scmp.eq.s32.totalorder %s188, 0
      %s191 = sadd.s32 %s190, 1
      %s192 = scalar_select %p189, %s190, %s191
      %p195 = pneg %p189
      %p196 = scmp.eq.s32.totalorder %s27, 3
      %p197 = por %p195, %p196
      %p198 = scmp.ne.s32.totalorder %s190, %s193
      %p199 = scmp.eq.s32.totalorder %s27, 0
      %p200 = por %p198, %p199
      %p201 = scmp.ne.s32.totalorder %s190, %s193
      %p202 = scmp.eq.s32.totalorder %s32, 3
      %p203 = por %p201, %p202
      %p204 = scmp.ne.s32.totalorder %s193, %s194
      %p205 = scmp.eq.s32.totalorder %s32, 0
      %p206 = por %p204, %p205
      %p207 = scmp.ne.s32.totalorder %s193, %s194
      %p208 = scmp.eq.s32.totalorder %s33, 3
      %p209 = por %p207, %p208
      %p211 = scmp.ne.s32.totalorder %s194, %s210
      %p212 = scmp.eq.s32.totalorder %s33, 0
      %p213 = por %p211, %p212
      %s214 = ssub.s32 %s35, %s42
      %p215 = scmp.eq.s32.totalorder %s214, 0
      %s217 = sadd.s32 %s216, 1
      %s218 = scalar_select %p215, %s216, %s217
      %p221 = pneg %p215
      %p222 = scmp.eq.s32.totalorder %s27, 3
      %p223 = por %p221, %p222
      %p224 = scmp.ne.s32.totalorder %s216, %s219
      %p225 = scmp.eq.s32.totalorder %s27, 0
      %p226 = por %p224, %p225
      %p227 = scmp.ne.s32.totalorder %s216, %s219
      %p228 = scmp.eq.s32.totalorder %s32, 3
      %p229 = por %p227, %p228
      %p230 = scmp.ne.s32.totalorder %s219, %s220
      %p231 = scmp.eq.s32.totalorder %s32, 0
      %p232 = por %p230, %p231
      %p233 = scmp.ne.s32.totalorder %s219, %s220
      %p234 = scmp.eq.s32.totalorder %s33, 3
      %p235 = por %p233, %p234
      %p237 = scmp.ne.s32.totalorder %s220, %s236
      %p238 = scmp.eq.s32.totalorder %s33, 0
      %p239 = por %p237, %p238
      %s240 = ssub.s32 %s35, %s42
      %p241 = scmp.eq.s32.totalorder %s240, 0
      %s243 = sadd.s32 %s242, 1
      %s244 = scalar_select %p241, %s242, %s243
      %p247 = pneg %p241
      %p248 = scmp.eq.s32.totalorder %s27, 3
      %p249 = por %p247, %p248
      %p250 = scmp.ne.s32.totalorder %s242, %s245
      %p251 = scmp.eq.s32.totalorder %s27, 0
      %p252 = por %p250, %p251
      %p253 = scmp.ne.s32.totalorder %s242, %s245
      %p254 = scmp.eq.s32.totalorder %s32, 3
      %p255 = por %p253, %p254
      %p256 = scmp.ne.s32.totalorder %s245, %s246
      %p257 = scmp.eq.s32.totalorder %s32, 0
      %p258 = por %p256, %p257
      %p259 = scmp.ne.s32.totalorder %s245, %s246
      %p260 = scmp.eq.s32.totalorder %s33, 3
      %p261 = por %p259, %p260
      %p263 = scmp.ne.s32.totalorder %s246, %s262
      %p264 = scmp.eq.s32.totalorder %s33, 0
      %p265 = por %p263, %p264
      %s266 = ssub.s32 %s35, %s42
      %p267 = scmp.eq.s32.totalorder %s266, 0
      %s269 = sadd.s32 %s268, 1
      %s270 = scalar_select %p267, %s268, %s269
      %p273 = pneg %p267
      %p274 = scmp.eq.s32.totalorder %s27, 3
      %p275 = por %p273, %p274
      %p276 = scmp.ne.s32.totalorder %s268, %s271
      %p277 = scmp.eq.s32.totalorder %s27, 0
      %p278 = por %p276, %p277
      %p279 = scmp.ne.s32.totalorder %s268, %s271
      %p280 = scmp.eq.s32.totalorder %s32, 3
      %p281 = por %p279, %p280
      %p282 = scmp.ne.s32.totalorder %s271, %s272
      %p283 = scmp.eq.s32.totalorder %s32, 0
      %p284 = por %p282, %p283
      %p285 = scmp.ne.s32.totalorder %s271, %s272
      %p286 = scmp.eq.s32.totalorder %s33, 3
      %p287 = por %p285, %p286
      %p289 = scmp.ne.s32.totalorder %s272, %s288
      %p290 = scmp.eq.s32.totalorder %s33, 0
      %p291 = por %p289, %p290
      %s292 = ssub.s32 %s35, %s42
      %p293 = scmp.eq.s32.totalorder %s292, 0
      %s295 = sadd.s32 %s294, 1
      %s296 = scalar_select %p293, %s294, %s295
      %p299 = pneg %p293
      %p300 = scmp.eq.s32.totalorder %s27, 3
      %p301 = por %p299, %p300
      %p302 = scmp.ne.s32.totalorder %s294, %s297
      %p303 = scmp.eq.s32.totalorder %s27, 0
      %p304 = por %p302, %p303
      %p305 = scmp.ne.s32.totalorder %s294, %s297
      %p306 = scmp.eq.s32.totalorder %s32, 3
      %p307 = por %p305, %p306
      %p308 = scmp.ne.s32.totalorder %s297, %s298
      %p309 = scmp.eq.s32.totalorder %s32, 0
      %p310 = por %p308, %p309
      %p311 = scmp.ne.s32.totalorder %s297, %s298
      %p312 = scmp.eq.s32.totalorder %s33, 3
      %p313 = por %p311, %p312
      %p315 = scmp.ne.s32.totalorder %s298, %s314
      %p316 = scmp.eq.s32.totalorder %s33, 0
      %p317 = por %p315, %p316
      %s318 = ssub.s32 %s35, %s42
      %p319 = scmp.eq.s32.totalorder %s318, 0
      %s321 = sadd.s32 %s320, 1
      %s322 = scalar_select %p319, %s320, %s321
      %p325 = pneg %p319
      %p326 = scmp.eq.s32.totalorder %s27, 3
      %p327 = por %p325, %p326
      %p328 = scmp.ne.s32.totalorder %s320, %s323
      %p329 = scmp.eq.s32.totalorder %s27, 0
      %p330 = por %p328, %p329
      %p331 = scmp.ne.s32.totalorder %s320, %s323
      %p332 = scmp.eq.s32.totalorder %s32, 3
      %p333 = por %p331, %p332
      %p334 = scmp.ne.s32.totalorder %s323, %s324
      %p335 = scmp.eq.s32.totalorder %s32, 0
      %p336 = por %p334, %p335
      %p337 = scmp.ne.s32.totalorder %s323, %s324
      %p338 = scmp.eq.s32.totalorder %s33, 3
      %p339 = por %p337, %p338
      %p341 = scmp.ne.s32.totalorder %s324, %s340
      %p342 = scmp.eq.s32.totalorder %s33, 0
      %p343 = por %p341, %p342
      %s344 = ssub.s32 %s35, %s42
      %p345 = scmp.eq.s32.totalorder %s344, 0
      %s347 = sadd.s32 %s346, 1
      %s348 = scalar_select %p345, %s346, %s347
      %p351 = pneg %p345
      %p352 = scmp.eq.s32.totalorder %s27, 3
      %p353 = por %p351, %p352
      %p354 = scmp.ne.s32.totalorder %s346, %s349
      %p355 = scmp.eq.s32.totalorder %s27, 0
      %p356 = por %p354, %p355
      %p357 = scmp.ne.s32.totalorder %s346, %s349
      %p358 = scmp.eq.s32.totalorder %s32, 3
      %p359 = por %p357, %p358
      %p360 = scmp.ne.s32.totalorder %s349, %s350
      %p361 = scmp.eq.s32.totalorder %s32, 0
      %p362 = por %p360, %p361
      %p363 = scmp.ne.s32.totalorder %s349, %s350
      %p364 = scmp.eq.s32.totalorder %s33, 3
      %p365 = por %p363, %p364
      %p367 = scmp.ne.s32.totalorder %s350, %s366
      %p368 = scmp.eq.s32.totalorder %s33, 0
      %p369 = por %p367, %p368
      %s370 = ssub.s32 %s35, %s42
      %p371 = scmp.eq.s32.totalorder %s370, 0
      %s373 = sadd.s32 %s372, 1
      %s374 = scalar_select %p371, %s372, %s373
      %p377 = pneg %p371
      %p378 = scmp.eq.s32.totalorder %s27, 3
      %p379 = por %p377, %p378
      %p380 = scmp.ne.s32.totalorder %s372, %s375
      %p381 = scmp.eq.s32.totalorder %s27, 0
      %p382 = por %p380, %p381
      %p383 = scmp.ne.s32.totalorder %s372, %s375
      %p384 = scmp.eq.s32.totalorder %s32, 3
      %p385 = por %p383, %p384
      %p386 = scmp.ne.s32.totalorder %s375, %s376
      %p387 = scmp.eq.s32.totalorder %s32, 0
      %p388 = por %p386, %p387
      %p389 = scmp.ne.s32.totalorder %s375, %s376
      %p390 = scmp.eq.s32.totalorder %s33, 3
      %p391 = por %p389, %p390
      %p393 = scmp.ne.s32.totalorder %s376, %s392
      %p394 = scmp.eq.s32.totalorder %s33, 0
      %p395 = por %p393, %p394
      %s396 = ssub.s32 %s35, %s42
      %p397 = scmp.eq.s32.totalorder %s396, 0
      %s399 = sadd.s32 %s398, 1
      %s400 = scalar_select %p397, %s398, %s399
      %p403 = pneg %p397
      %p404 = scmp.eq.s32.totalorder %s27, 3
      %p405 = por %p403, %p404
      %p406 = scmp.ne.s32.totalorder %s398, %s401
      %p407 = scmp.eq.s32.totalorder %s27, 0
      %p408 = por %p406, %p407
      %p409 = scmp.ne.s32.totalorder %s398, %s401
      %p410 = scmp.eq.s32.totalorder %s32, 3
      %p411 = por %p409, %p410
      %p412 = scmp.ne.s32.totalorder %s401, %s402
      %p413 = scmp.eq.s32.totalorder %s32, 0
      %p414 = por %p412, %p413
      %p415 = scmp.ne.s32.totalorder %s401, %s402
      %p416 = scmp.eq.s32.totalorder %s33, 3
      %p417 = por %p415, %p416
      %p419 = scmp.ne.s32.totalorder %s402, %s418
      %p420 = scmp.eq.s32.totalorder %s33, 0
      %p421 = por %p419, %p420
      %s422 = ssub.s32 %s35, %s42
      %p423 = scmp.eq.s32.totalorder %s422, 0
      %s425 = sadd.s32 %s424, 1
      %s426 = scalar_select %p423, %s424, %s425
      %p429 = pneg %p423
      %p430 = scmp.eq.s32.totalorder %s27, 3
      %p431 = por %p429, %p430
      %p432 = scmp.ne.s32.totalorder %s424, %s427
      %p433 = scmp.eq.s32.totalorder %s27, 0
      %p434 = por %p432, %p433
      %p435 = scmp.ne.s32.totalorder %s424, %s427
      %p436 = scmp.eq.s32.totalorder %s32, 3
      %p437 = por %p435, %p436
      %p438 = scmp.ne.s32.totalorder %s427, %s428
      %p439 = scmp.eq.s32.totalorder %s32, 0
      %p440 = por %p438, %p439
      %p441 = scmp.ne.s32.totalorder %s427, %s428
      %p442 = scmp.eq.s32.totalorder %s33, 3
      %p443 = por %p441, %p442
      %p445 = scmp.ne.s32.totalorder %s428, %s444
      %p446 = scmp.eq.s32.totalorder %s33, 0
      %p447 = por %p445, %p446
      %s449 = sadd.s32 %s448, 1
      %p452 = scmp.eq.s32.totalorder %s27, 3
      %p453 = scmp.ne.s32.totalorder %s448, %s450
      %p454 = scmp.eq.s32.totalorder %s27, 0
      %p455 = por %p453, %p454
      %p456 = scmp.ne.s32.totalorder %s448, %s450
      %p457 = scmp.eq.s32.totalorder %s32, 3
      %p458 = por %p456, %p457
      %p459 = scmp.ne.s32.totalorder %s450, %s451
      %p460 = scmp.eq.s32.totalorder %s32, 0
      %p461 = por %p459, %p460
      %p462 = scmp.ne.s32.totalorder %s450, %s451
      %p463 = scmp.eq.s32.totalorder %s33, 3
      %p464 = por %p462, %p463
      %p466 = scmp.ne.s32.totalorder %s451, %s465
      %p467 = scmp.eq.s32.totalorder %s33, 0
      %p468 = por %p466, %p467
      %s470 = sadd.s32 %s469, 1
      %p473 = scmp.eq.s32.totalorder %s27, 3
      %p474 = scmp.ne.s32.totalorder %s469, %s471
      %p475 = scmp.eq.s32.totalorder %s27, 0
      %p476 = por %p474, %p475
      %p477 = scmp.ne.s32.totalorder %s469, %s471
      %p478 = scmp.eq.s32.totalorder %s32, 3
      %p479 = por %p477, %p478
      %p480 = scmp.ne.s32.totalorder %s471, %s472
      %p481 = scmp.eq.s32.totalorder %s32, 0
      %p482 = por %p480, %p481
      %p483 = scmp.ne.s32.totalorder %s471, %s472
      %p484 = scmp.eq.s32.totalorder %s33, 3
      %p485 = por %p483, %p484
      %p487 = scmp.ne.s32.totalorder %s472, %s486
      %p488 = scmp.eq.s32.totalorder %s33, 0
      %p489 = por %p487, %p488
      %s490 = ssub.s32 %s34, %s46
      %p491 = scmp.eq.s32.totalorder %s490, 0
      %s493 = sadd.s32 %s492, 1
      %s494 = scalar_select %p491, %s492, %s493
      %p497 = pneg %p491
      %p498 = scmp.eq.s32.totalorder %s27, 3
      %p499 = por %p497, %p498
      %p500 = scmp.ne.s32.totalorder %s492, %s495
      %p501 = scmp.eq.s32.totalorder %s27, 0
      %p502 = por %p500, %p501
      %p503 = scmp.ne.s32.totalorder %s492, %s495
      %p504 = scmp.eq.s32.totalorder %s32, 3
      %p505 = por %p503, %p504
      %p506 = scmp.ne.s32.totalorder %s495, %s496
      %p507 = scmp.eq.s32.totalorder %s32, 0
      %p508 = por %p506, %p507
      %p509 = scmp.ne.s32.totalorder %s495, %s496
      %p510 = scmp.eq.s32.totalorder %s33, 3
      %p511 = por %p509, %p510
      %p513 = scmp.ne.s32.totalorder %s496, %s512
      %p514 = scmp.eq.s32.totalorder %s33, 0
      %p515 = por %p513, %p514
      %p516 = scmp.le.s32.totalorder 1, %s27
      %p517 = scmp.lt.s32.totalorder %s27, 5
      %p518 = pnand %p516, %p517
      %p519 = pneg %p518
      // Predicated region
      $region9: #{_lambda_.1} parent=5 // pred_check
        _
      $region10: #{_lambda_.1} parent=5 // pred_check_branch
        %521 = sbr.rel (%p518) target = $region12
      $region11: #{_lambda_.1} parent=5 // pred_region
        %s522 = ssub.s32 %s27, 1
        // Predicated region
        $region13: #{_lambda_.1} parent=11 // pred_check
          %p523 = pneg %p86
        $region14: #{_lambda_.1} parent=11 // pred_check_branch
          %525 = sbr.rel (%p523) target = $region16
        $region15: #{_lambda_.1} parent=11 // pred_region
          _
        $region16: #{_lambda_.1} parent=11 // pred_fallthru
          _
        // Predicated region
        $region17: #{_lambda_.1} parent=11 // pred_check
          %p526 = pneg %p107
        $region18: #{_lambda_.1} parent=11 // pred_check_branch
          %528 = sbr.rel (%p526) target = $region20
        $region19: #{_lambda_.1} parent=11 // pred_region
          _
        $region20: #{_lambda_.1} parent=11 // pred_fallthru
          _
        // Predicated region
        $region21: #{_lambda_.1} parent=11 // pred_check
          %p529 = pneg %p128
        $region22: #{_lambda_.1} parent=11 // pred_check_branch
          %531 = sbr.rel (%p529) target = $region24
        $region23: #{_lambda_.1} parent=11 // pred_region
          _
        $region24: #{_lambda_.1} parent=11 // pred_fallthru
          _
        // Predicated region
        $region25: #{_lambda_.1} parent=11 // pred_check
          %p532 = pneg %p461
        $region26: #{_lambda_.1} parent=11 // pred_check_branch
          %534 = sbr.rel (%p532) target = $region28
        $region27: #{_lambda_.1} parent=11 // pred_region
          _
        $region28: #{_lambda_.1} parent=11 // pred_fallthru
          _
        // Predicated region
        $region29: #{_lambda_.1} parent=11 // pred_check
          %p535 = pneg %p482
        $region30: #{_lambda_.1} parent=11 // pred_check_branch
          %537 = sbr.rel (%p535) target = $region32
        $region31: #{_lambda_.1} parent=11 // pred_region
          _
        $region32: #{_lambda_.1} parent=11 // pred_fallthru
          _
      $region12: #{_lambda_.1} parent=5 // pred_fallthru
        _
      %p538 = scmp.lt.s32.totalorder %s27, 4
      // Predicated region
      $region33: #{_lambda_.1} parent=5 // pred_check
        %p539 = pneg %p538
      $region34: #{_lambda_.1} parent=5 // pred_check_branch
        %541 = sbr.rel (%p539) target = $region36
      $region35: #{_lambda_.1} parent=5 // pred_region
        // Predicated region
        $region37: #{_lambda_.1} parent=35 // pred_check
          %p542 = pneg %p59
        $region38: #{_lambda_.1} parent=35 // pred_check_branch
          %544 = sbr.rel (%p542) target = $region40
        $region39: #{_lambda_.1} parent=35 // pred_region
          %p545 = scmp.lt.s32.totalorder %s34, 1
          %s546 = scalar_select %p545, %s34, 1
          %s547 = smul.addr %s546, 2
          %s548 = smul.addr %s547, 8
          %s549 = scalar_lea.vmem %s0, %s548
        $region40: #{_lambda_.1} parent=35 // pred_fallthru
          _
        // Predicated region
        $region41: #{_lambda_.1} parent=35 // pred_check
          %p550 = pneg %p148
        $region42: #{_lambda_.1} parent=35 // pred_check_branch
          %552 = sbr.rel (%p550) target = $region44
        $region43: #{_lambda_.1} parent=35 // pred_region
          %p553 = scmp.lt.s32.totalorder %s35, 1
          %s554 = scalar_select %p553, %s35, 1
          %s555 = scalar_lea.vmem %s4, %s554
        $region44: #{_lambda_.1} parent=35 // pred_fallthru
          _
        // Predicated region
        $region45: #{_lambda_.1} parent=35 // pred_check
          %p556 = pneg %p174
        $region46: #{_lambda_.1} parent=35 // pred_check_branch
          %558 = sbr.rel (%p556) target = $region48
        $region47: #{_lambda_.1} parent=35 // pred_region
          %p559 = scmp.lt.s32.totalorder %s35, 1
          %s560 = scalar_select %p559, %s35, 1
          %s561 = scalar_lea.vmem %s5, %s560
        $region48: #{_lambda_.1} parent=35 // pred_fallthru
          _
        // Predicated region
        $region49: #{_lambda_.1} parent=35 // pred_check
          %p562 = pneg %p200
        $region50: #{_lambda_.1} parent=35 // pred_check_branch
          %564 = sbr.rel (%p562) target = $region52
        $region51: #{_lambda_.1} parent=35 // pred_region
          %p565 = scmp.lt.s32.totalorder %s35, 1
          %s566 = scalar_select %p565, %s35, 1
          %s567 = smul.addr %s566, 4
          %s568 = smul.addr %s567, 4
          %s569 = scalar_lea.vmem %s6, %s568
        $region52: #{_lambda_.1} parent=35 // pred_fallthru
          _
        // Predicated region
        $region53: #{_lambda_.1} parent=35 // pred_check
          %p570 = pneg %p226
        $region54: #{_lambda_.1} parent=35 // pred_check_branch
          %572 = sbr.rel (%p570) target = $region56
        $region55: #{_lambda_.1} parent=35 // pred_region
          %p573 = scmp.lt.s32.totalorder %s35, 1
          %s574 = scalar_select %p573, %s35, 1
          %s575 = scalar_lea.vmem %s7, %s574
        $region56: #{_lambda_.1} parent=35 // pred_fallthru
          _
        // Predicated region
        $region57: #{_lambda_.1} parent=35 // pred_check
          %p576 = pneg %p252
        $region58: #{_lambda_.1} parent=35 // pred_check_branch
          %578 = sbr.rel (%p576) target = $region60
        $region59: #{_lambda_.1} parent=35 // pred_region
          %p579 = scmp.lt.s32.totalorder %s35, 1
          %s580 = scalar_select %p579, %s35, 1
          %s581 = smul.addr %s580, 4
          %s582 = smul.addr %s581, 4
          %s583 = scalar_lea.vmem %s8, %s582
        $region60: #{_lambda_.1} parent=35 // pred_fallthru
          _
        // Predicated region
        $region61: #{_lambda_.1} parent=35 // pred_check
          %p584 = pneg %p278
        $region62: #{_lambda_.1} parent=35 // pred_check_branch
          %586 = sbr.rel (%p584) target = $region64
        $region63: #{_lambda_.1} parent=35 // pred_region
          %p587 = scmp.lt.s32.totalorder %s35, 1
          %s588 = scalar_select %p587, %s35, 1
          %s589 = scalar_lea.vmem %s9, %s588
        $region64: #{_lambda_.1} parent=35 // pred_fallthru
          _
        // Predicated region
        $region65: #{_lambda_.1} parent=35 // pred_check
          %p590 = pneg %p304
        $region66: #{_lambda_.1} parent=35 // pred_check_branch
          %592 = sbr.rel (%p590) target = $region68
        $region67: #{_lambda_.1} parent=35 // pred_region
          %p593 = scmp.lt.s32.totalorder %s35, 1
          %s594 = scalar_select %p593, %s35, 1
          %s595 = scalar_lea.vmem %s10, %s594
        $region68: #{_lambda_.1} parent=35 // pred_fallthru
          _
        // Predicated region
        $region69: #{_lambda_.1} parent=35 // pred_check
          %p596 = pneg %p330
        $region70: #{_lambda_.1} parent=35 // pred_check_branch
          %598 = sbr.rel (%p596) target = $region72
        $region71: #{_lambda_.1} parent=35 // pred_region
          %p599 = scmp.lt.s32.totalorder %s35, 1
          %s600 = scalar_select %p599, %s35, 1
          %s601 = scalar_lea.vmem %s11, %s600
        $region72: #{_lambda_.1} parent=35 // pred_fallthru
          _
        // Predicated region
        $region73: #{_lambda_.1} parent=35 // pred_check
          %p602 = pneg %p356
        $region74: #{_lambda_.1} parent=35 // pred_check_branch
          %604 = sbr.rel (%p602) target = $region76
        $region75: #{_lambda_.1} parent=35 // pred_region
          %p605 = scmp.lt.s32.totalorder %s35, 1
          %s606 = scalar_select %p605, %s35, 1
          %s607 = smul.addr %s606, 4
          %s608 = smul.addr %s607, 4
          %s609 = scalar_lea.vmem %s12, %s608
        $region76: #{_lambda_.1} parent=35 // pred_fallthru
          _
        // Predicated region
        $region77: #{_lambda_.1} parent=35 // pred_check
          %p610 = pneg %p382
        $region78: #{_lambda_.1} parent=35 // pred_check_branch
          %612 = sbr.rel (%p610) target = $region80
        $region79: #{_lambda_.1} parent=35 // pred_region
          %p613 = scmp.lt.s32.totalorder %s35, 1
          %s614 = scalar_select %p613, %s35, 1
          %s615 = scalar_lea.vmem %s13, %s614
        $region80: #{_lambda_.1} parent=35 // pred_fallthru
          _
        // Predicated region
        $region81: #{_lambda_.1} parent=35 // pred_check
          %p616 = pneg %p408
        $region82: #{_lambda_.1} parent=35 // pred_check_branch
          %618 = sbr.rel (%p616) target = $region84
        $region83: #{_lambda_.1} parent=35 // pred_region
          %p619 = scmp.lt.s32.totalorder %s35, 1
          %s620 = scalar_select %p619, %s35, 1
          %s621 = smul.addr %s620, 8
          %s622 = smul.addr %s621, 4
          %s623 = scalar_lea.vmem %s14, %s622
        $region84: #{_lambda_.1} parent=35 // pred_fallthru
          _
        // Predicated region
        $region85: #{_lambda_.1} parent=35 // pred_check
          %p624 = pneg %p434
        $region86: #{_lambda_.1} parent=35 // pred_check_branch
          %626 = sbr.rel (%p624) target = $region88
        $region87: #{_lambda_.1} parent=35 // pred_region
          %p627 = scmp.lt.s32.totalorder %s35, 1
          %s628 = scalar_select %p627, %s35, 1
          %s629 = scalar_lea.vmem %s15, %s628
        $region88: #{_lambda_.1} parent=35 // pred_fallthru
          _
      $region36: #{_lambda_.1} parent=5 // pred_fallthru
        _
      %p630 = scmp.le.s32.totalorder 1, %s27
      %p631 = scmp.lt.s32.totalorder %s27, 5
      %p632 = pnand %p630, %p631
      %p633 = pneg %p632
      // Predicated region
      $region89: #{_lambda_.1} parent=5 // pred_check
        _
      $region90: #{_lambda_.1} parent=5 // pred_check_branch
        %635 = sbr.rel (%p632) target = $region92
      $region91: #{_lambda_.1} parent=5 // pred_region
        %s636 = ssub.s32 %s27, 1
        %p637 = scmp.lt.s32.totalorder %s36, 1
        %s638 = scalar_select %p637, %s36, 1
        %s639 = smul.addr %s638, 2
        %s640 = smul.addr %s639, 8
        %s641 = scalar_lea.vmem %s0, %s640
        %p642 = pneg %p65
        %p643 = pneg %p62
        %p644 = pneg %p86
        %p645 = pneg %p83
        %p646 = pneg %p107
        %p647 = pneg %p104
        %p648 = pneg %p128
        %p649 = pneg %p125
        %p650 = scmp.lt.s32.totalorder %s37, 1
        %s651 = scalar_select %p650, %s37, 1
        %s652 = scalar_lea.vmem %s4, %s651
        %p653 = pneg %p154
        %p654 = pneg %p151
        %p655 = scmp.lt.s32.totalorder %s37, 1
        %s656 = scalar_select %p655, %s37, 1
        %s657 = scalar_lea.vmem %s5, %s656
        %p658 = pneg %p180
        %p659 = pneg %p177
        %p660 = scmp.lt.s32.totalorder %s37, 1
        %s661 = scalar_select %p660, %s37, 1
        %s662 = smul.addr %s661, 4
        %s663 = smul.addr %s662, 4
        %s664 = scalar_lea.vmem %s6, %s663
        %p665 = pneg %p206
        %p666 = pneg %p203
        %p667 = scmp.lt.s32.totalorder %s37, 1
        %s668 = scalar_select %p667, %s37, 1
        %s669 = scalar_lea.vmem %s7, %s668
        %p670 = pneg %p232
        %p671 = pneg %p229
        %p672 = scmp.lt.s32.totalorder %s37, 1
        %s673 = scalar_select %p672, %s37, 1
        %s674 = smul.addr %s673, 4
        %s675 = smul.addr %s674, 4
        %s676 = scalar_lea.vmem %s8, %s675
        %p677 = pneg %p258
        %p678 = pneg %p255
        %p679 = scmp.lt.s32.totalorder %s37, 1
        %s680 = scalar_select %p679, %s37, 1
        %s681 = scalar_lea.vmem %s9, %s680
        %p682 = pneg %p284
        %p683 = pneg %p281
        %p684 = scmp.lt.s32.totalorder %s37, 1
        %s685 = scalar_select %p684, %s37, 1
        %s686 = scalar_lea.vmem %s10, %s685
        %p687 = pneg %p310
        %p688 = pneg %p307
        %p689 = scmp.lt.s32.totalorder %s37, 1
        %s690 = scalar_select %p689, %s37, 1
        %s691 = scalar_lea.vmem %s11, %s690
        %p692 = pneg %p336
        %p693 = pneg %p333
        %p694 = scmp.lt.s32.totalorder %s37, 1
        %s695 = scalar_select %p694, %s37, 1
        %s696 = smul.addr %s695, 4
        %s697 = smul.addr %s696, 4
        %s698 = scalar_lea.vmem %s12, %s697
        %p699 = pneg %p362
        %p700 = pneg %p359
        %p701 = scmp.lt.s32.totalorder %s37, 1
        %s702 = scalar_select %p701, %s37, 1
        %s703 = scalar_lea.vmem %s13, %s702
        %p704 = pneg %p388
        %p705 = pneg %p385
        %p706 = scmp.lt.s32.totalorder %s37, 1
        %s707 = scalar_select %p706, %s37, 1
        %s708 = smul.addr %s707, 8
        %s709 = smul.addr %s708, 4
        %s710 = scalar_lea.vmem %s14, %s709
        %p711 = pneg %p414
        %p712 = pneg %p411
        %p713 = scmp.lt.s32.totalorder %s37, 1
        %s714 = scalar_select %p713, %s37, 1
        %s715 = scalar_lea.vmem %s15, %s714
        %p716 = pneg %p440
        %p717 = pneg %p437
        %p718 = pneg %p461
        %p719 = pneg %p458
        %p720 = pneg %p482
        %p721 = pneg %p479
        %p722 = pneg %p508
        %p723 = pneg %p505
        %s724 = sand.u32 %s495, 1
        %s725 = scalar_lea.sflag [#allocation3], %s724
        %s726 = sand.u32 %s495, 1
        %s727 = smul.addr %s726, 16
        %s728 = scalar_lea.vmem [#allocation2], %s727
        %p729 = scmp.lt.s32.totalorder %s36, 1
        %s730 = scalar_select %p729, %s36, 1
        %s731 = smul.addr %s730, 2
        %s732 = smul.addr %s731, 8
        %s733 = scalar_lea.vmem %s0, %s732
        %p734 = scmp.lt.s32.totalorder %s37, 1
        %s735 = scalar_select %p734, %s37, 1
        %s736 = scalar_lea.vmem %s4, %s735
        %p737 = scmp.lt.s32.totalorder %s37, 1
        %s738 = scalar_select %p737, %s37, 1
        %s739 = scalar_lea.vmem %s5, %s738
        %p740 = scmp.lt.s32.totalorder %s37, 1
        %s741 = scalar_select %p740, %s37, 1
        %s742 = smul.addr %s741, 4
        %s743 = smul.addr %s742, 4
        %s744 = scalar_lea.vmem %s6, %s743
        %p745 = scmp.lt.s32.totalorder %s37, 1
        %s746 = scalar_select %p745, %s37, 1
        %s747 = scalar_lea.vmem %s7, %s746
        %p748 = scmp.lt.s32.totalorder %s37, 1
        %s749 = scalar_select %p748, %s37, 1
        %s750 = smul.addr %s749, 4
        %s751 = smul.addr %s750, 4
        %s752 = scalar_lea.vmem %s8, %s751
        %p753 = scmp.lt.s32.totalorder %s37, 1
        %s754 = scalar_select %p753, %s37, 1
        %s755 = scalar_lea.vmem %s9, %s754
        %p756 = scmp.lt.s32.totalorder %s37, 1
        %s757 = scalar_select %p756, %s37, 1
        %s758 = scalar_lea.vmem %s10, %s757
        %p759 = scmp.lt.s32.totalorder %s37, 1
        %s760 = scalar_select %p759, %s37, 1
        %s761 = scalar_lea.vmem %s11, %s760
        %p762 = scmp.lt.s32.totalorder %s37, 1
        %s763 = scalar_select %p762, %s37, 1
        %s764 = smul.addr %s763, 4
        %s765 = smul.addr %s764, 4
        %s766 = scalar_lea.vmem %s12, %s765
        %p767 = scmp.lt.s32.totalorder %s37, 1
        %s768 = scalar_select %p767, %s37, 1
        %s769 = scalar_lea.vmem %s13, %s768
        %p770 = scmp.lt.s32.totalorder %s37, 1
        %s771 = scalar_select %p770, %s37, 1
        %s772 = smul.addr %s771, 8
        %s773 = smul.addr %s772, 4
        %s774 = scalar_lea.vmem %s14, %s773
        %p775 = scmp.lt.s32.totalorder %s37, 1
        %s776 = scalar_select %p775, %s37, 1
        %s777 = scalar_lea.vmem %s15, %s776
        %p779 = scmp.eq.s32.totalorder %s37, 0
        // Predicated region
        $region93: #{_lambda_.1} parent=91 // pred_check
          %p780 = pneg %p779
        $region94: #{_lambda_.1} parent=91 // pred_check_branch
          %782 = sbr.rel (%p780) target = $region96
        $region95: #{_lambda_.1} parent=91 // pred_region
          %v783 = vld [vmem:[%s733] sm:$0xff]
          %v784 = vld [vmem:[%s733 + $0x8] sm:$0xff]
          %v785 = vpack.c.bf16 %v784, %v783
          %v786 = vld [vmem:[%s1] sm:$0xf]
          %v787 = vld [vmem:[%s1 + $0x4] sm:$0xf]
          %v788 = vld [vmem:[%s1 + $0x8] sm:$0xf]
          %v789 = vld [vmem:[%s1 + $0xc] sm:$0xf]
          %v790 = vld [vmem:[%s1 + $0x10] sm:$0xf]
          %v791 = vld [vmem:[%s1 + $0x14] sm:$0xf]
          %v792 = vld [vmem:[%s2] sm:$0x1]
          %v794 = vlaneseq
          %v795 = vshrl.u32 %v794, 7
          %v796 = vsub.s32 0, %v795
          %v797 = vrot.slane %v792, %v796
          %v805 = vunpack.c.l.b16 %v786
          %v806 = vunpack.c.l.b16 %v787
          %v807 = vunpack.c.l.b16 %v788
          %v808 = vunpack.c.l.b16 %v789
          %v809 = vunpack.c.l.b16 %v790
          %v810 = vunpack.c.l.b16 %v791
          %v811 = vpack.c.b16 %v806, %v805
          %v812 = vpack.c.b16 %v808, %v807
          %v813 = vpack.c.b16 %v810, %v809
          %vm817 = vcmask 392192
          %v819 = vsel %vm817, %v785, 0
          %821 = vmatprep.subr.bf16.mxu0 0
          %822 = vmatpush1.bf16.msra.mxu0 %v811
          %823 = vmatprep.subr.bf16.mxu0 0
          %824 = vmatpush1.bf16.msra.mxu0 %v812
          %825 = vmatprep.subr.bf16.mxu0 0
          %826 = vmatpush1.bf16.msra.mxu0 %v813
          %827 = vmatprep.subr.bf16.mxu0 0
          %828 = vmatpush1.bf16.msra.mxu0 0
          %829 = vmatprep.subr.bf16.mxu0 0
          %830 = vmatpush1.bf16.msra.mxu0 0
          %831 = vmatprep.subr.bf16.mxu0 0
          %832 = vmatpush1.bf16.msra.mxu0 0
          %833 = vmatprep.subr.bf16.mxu0 0
          %834 = vmatpush1.bf16.msra.mxu0 0
          %835 = vmatprep.subr.bf16.mxu0 0
          %836 = vmatpush1.bf16.msra.mxu0 0
          %837 = vmatprep.subr.bf16.mxu0 0
          %838 = vmatpush1.bf16.msra.mxu0 0
          %839 = vmatprep.subr.bf16.mxu0 0
          %840 = vmatpush1.bf16.msra.mxu0 0
          %841 = vmatprep.subr.bf16.mxu0 0
          %842 = vmatpush1.bf16.msra.mxu0 0
          %843 = vmatprep.subr.bf16.mxu0 0
          %844 = vmatpush1.bf16.msra.mxu0 0
          %845 = vmatprep.subr.bf16.mxu0 0
          %846 = vmatpush1.bf16.msra.mxu0 0
          %847 = vmatprep.subr.bf16.mxu0 0
          %848 = vmatpush1.bf16.msra.mxu0 0
          %849 = vmatprep.subr.bf16.mxu0 0
          %850 = vmatpush1.bf16.msra.mxu0 0
          %851 = vmatprep.subr.bf16.mxu0 0
          %852 = vmatpush1.bf16.msra.mxu0 0
          %853 = vmatprep.mubr.bf16.mxu0 0
          %854 = vmatmul.mubr.bf16.gmra.mrb[0].mxu0 %v819
          %v855 = vpop.f32.mrb[0].mxu0
          %v856 = vadd.f32 %v797, %v855
          %v857 = vpop.f32.mrb[0].mxu0
          %v858 = vpop.f32.mrb[0].mxu0
          %v859 = vadd.f32 %v797, %v858
          %v860 = vpop.f32.mrb[0].mxu0
          %861 = vdwg.mxu0
          %v862 = vld [vmem:[%s3] sm:$0xff]
          %v863 = vld [vmem:[%s3 + $0x8] sm:$0xff]
          %v864 = vadd.f32 %v856, %v862
          %v865 = vadd.f32 %v859, %v863
          %vm866 = vcmask 261120
          %867 = vst.msk [vmem:[%s728] sm:$0xff] %vm866, %v864
          %868 = vst.msk [vmem:[%s728 + $0x8] sm:$0xff] %vm866, %v865
        $region96: #{_lambda_.1} parent=91 // pred_fallthru
          _
        %v869 = vld [vmem:[%s728] sm:$0xff]
        %v870 = vld [vmem:[%s728 + $0x8] sm:$0xff]
        %v871 = vld [vmem:[%s736] sm:$0x1]
        %v872 = vld [vmem:[%s739] sm:$0x1]
        %vm873 = vcmask 261120
        %v874 = vsel %vm873, %v869, 0.0
        %875 = vadd.xlane.f32.xlu0 %v874
        %v876 = vpop.xlane.xlu0 %875
        %v877 = vsel %vm873, %v870, 0.0
        %878 = vadd.xlane.f32.xlu0 %v877
        %v879 = vpop.xlane.xlu0 %878
        %v880 = vrcp.pop 32.0
        %v881 = vmul.f32 %v876, %v880
        %v882 = vmul.f32 %v879, %v880
        %v883 = vsub.f32 %v869, %v881
        %v884 = vsub.f32 %v870, %v882
        %v885 = vmul.f32 %v883, %v883
        %v886 = vmul.f32 %v884, %v884
        %v887 = vsel %vm873, %v885, 0.0
        %888 = vadd.xlane.f32.xlu0 %v887
        %v889 = vpop.xlane.xlu0 %888
        %v890 = vsel %vm873, %v886, 0.0
        %891 = vadd.xlane.f32.xlu0 %v890
        %v892 = vpop.xlane.xlu0 %891
        %v893 = vmul.f32 %v889, %v880
        %v894 = vmul.f32 %v892, %v880
        %v895 = vadd.f32 %v893, 1e-06
        %v896 = vadd.f32 %v894, 1e-06
        %v897 = vrsqrt.pop %v895
        %v898 = vrsqrt.pop %v896
        %v899 = vmul.f32 %v883, %v897
        %v900 = vmul.f32 %v884, %v898
        %v902 = vlaneseq
        %v903 = vshrl.u32 %v902, 7
        %v904 = vsub.s32 0, %v903
        %v905 = vrot.slane %v871, %v904
        %v907 = vmul.f32 %v899, %v905
        %v908 = vmul.f32 %v900, %v905
        %v910 = vlaneseq
        %v911 = vshrl.u32 %v910, 7
        %v912 = vsub.s32 0, %v911
        %v913 = vrot.slane %v872, %v912
        %v915 = vadd.f32 %v907, %v913
        %v916 = vadd.f32 %v908, %v913
        %v917 = vpack.c.bf16 %v916, %v915
        %v918 = vld [vmem:[%s744] sm:$0xf]
        %v919 = vld [vmem:[%s744 + $0x4] sm:$0xf]
        %v920 = vld [vmem:[%s744 + $0x8] sm:$0xf]
        %v921 = vld [vmem:[%s744 + $0xc] sm:$0xf]
        %v922 = vld [vmem:[%s747] sm:$0x1]
        %v924 = vlaneseq
        %v925 = vshrl.u32 %v924, 7
        %v926 = vsub.s32 0, %v925
        %v927 = vrot.slane %v922, %v926
        %v933 = vunpack.c.l.b16 %v918
        %v934 = vunpack.c.l.b16 %v919
        %v935 = vunpack.c.l.b16 %v920
        %v936 = vunpack.c.l.b16 %v921
        %v937 = vpack.c.b16 %v934, %v933
        %v938 = vpack.c.b16 %v936, %v935
        %v942 = vsel %vm873, %v917, 0
        %944 = vmatprep.subr.bf16.mxu0 0
        %945 = vmatpush1.bf16.msra.mxu0 %v937
        %946 = vmatprep.subr.bf16.mxu0 0
        %947 = vmatpush1.bf16.msra.mxu0 %v938
        %948 = vmatprep.subr.bf16.mxu0 0
        %949 = vmatpush1.bf16.msra.mxu0 0
        %950 = vmatprep.subr.bf16.mxu0 0
        %951 = vmatpush1.bf16.msra.mxu0 0
        %952 = vmatprep.subr.bf16.mxu0 0
        %953 = vmatpush1.bf16.msra.mxu0 0
        %954 = vmatprep.subr.bf16.mxu0 0
        %955 = vmatpush1.bf16.msra.mxu0 0
        %956 = vmatprep.subr.bf16.mxu0 0
        %957 = vmatpush1.bf16.msra.mxu0 0
        %958 = vmatprep.subr.bf16.mxu0 0
        %959 = vmatpush1.bf16.msra.mxu0 0
        %960 = vmatprep.subr.bf16.mxu0 0
        %961 = vmatpush1.bf16.msra.mxu0 0
        %962 = vmatprep.subr.bf16.mxu0 0
        %963 = vmatpush1.bf16.msra.mxu0 0
        %964 = vmatprep.subr.bf16.mxu0 0
        %965 = vmatpush1.bf16.msra.mxu0 0
        %966 = vmatprep.subr.bf16.mxu0 0
        %967 = vmatpush1.bf16.msra.mxu0 0
        %968 = vmatprep.subr.bf16.mxu0 0
        %969 = vmatpush1.bf16.msra.mxu0 0
        %970 = vmatprep.subr.bf16.mxu0 0
        %971 = vmatpush1.bf16.msra.mxu0 0
        %972 = vmatprep.subr.bf16.mxu0 0
        %973 = vmatpush1.bf16.msra.mxu0 0
        %974 = vmatprep.subr.bf16.mxu0 0
        %975 = vmatpush1.bf16.msra.mxu0 0
        %976 = vmatprep.mubr.bf16.mxu0 0
        %977 = vmatmul.mubr.bf16.gmra.mrb[0].mxu0 %v942
        %v978 = vpop.f32.mrb[0].mxu0
        %v979 = vadd.f32 %v927, %v978
        %v980 = vpop.f32.mrb[0].mxu0
        %v981 = vpop.f32.mrb[0].mxu0
        %v982 = vadd.f32 %v927, %v981
        %v983 = vpop.f32.mrb[0].mxu0
        %984 = vdwg.mxu0
        %987 = vrot.lane.b32.xlu0 %v979, 96
        %v988 = vpop.permute.xlu0 %987
        %989 = vrot.lane.b32.xlu0 %v982, 96
        %v990 = vpop.permute.xlu0 %989
        %vm991 = vcmask 64512
        %v992 = vsel %vm991, %v979, 0
        %v994 = vsel %vm991, %v982, 0
        %v996 = vsel %vm991, %v988, 0
        %v998 = vsel %vm991, %v990, 0
        %1000 = vmatprep.subr.mxu0 0.0
        %1001 = vmatpush1.xpose.msra.mxu0 %v996
        %1002 = vmatprep.subr.mxu0 0.0
        %1003 = vmatpush1.xpose.msra.mxu0 %v998
        %1004 = vmatprep.subr.mxu0 0.0
        %1005 = vmatpush1.xpose.msra.mxu0 0.0
        %1006 = vmatprep.subr.mxu0 0.0
        %1007 = vmatpush1.xpose.msra.mxu0 0.0
        %1008 = vmatprep.subr.mxu0 0.0
        %1009 = vmatpush1.xpose.msra.mxu0 0.0
        %1010 = vmatprep.subr.mxu0 0.0
        %1011 = vmatpush1.xpose.msra.mxu0 0.0
        %1012 = vmatprep.subr.mxu0 0.0
        %1013 = vmatpush1.xpose.msra.mxu0 0.0
        %1014 = vmatprep.subr.mxu0 0.0
        %1015 = vmatpush1.xpose.msra.mxu0 0.0
        %1016 = vmatprep.subr.mxu0 0.0
        %1017 = vmatpush1.xpose.msra.mxu0 0.0
        %1018 = vmatprep.subr.mxu0 0.0
        %1019 = vmatpush1.xpose.msra.mxu0 0.0
        %1020 = vmatprep.subr.mxu0 0.0
        %1021 = vmatpush1.xpose.msra.mxu0 0.0
        %1022 = vmatprep.subr.mxu0 0.0
        %1023 = vmatpush1.xpose.msra.mxu0 0.0
        %1024 = vmatprep.subr.mxu0 0.0
        %1025 = vmatpush1.xpose.msra.mxu0 0.0
        %1026 = vmatprep.subr.mxu0 0.0
        %1027 = vmatpush1.xpose.msra.mxu0 0.0
        %1028 = vmatprep.subr.mxu0 0.0
        %1029 = vmatpush1.xpose.msra.mxu0 0.0
        %1030 = vmatprep.subr.mxu0 0.0
        %1031 = vmatpush1.xpose.msra.mxu0 0.0
        %1032 = vmatprep.subr.mxu0 0.0
        %1033 = vmatpush1.xpose.msra.mxu0 0.0
        %1034 = vmatprep.subr.mxu0 0.0
        %1035 = vmatpush1.xpose.msra.mxu0 0.0
        %1036 = vmatprep.subr.mxu0 0.0
        %1037 = vmatpush1.xpose.msra.mxu0 0.0
        %1038 = vmatprep.subr.mxu0 0.0
        %1039 = vmatpush1.xpose.msra.mxu0 0.0
        %1040 = vmatprep.subr.mxu0 0.0
        %1041 = vmatpush1.xpose.msra.mxu0 0.0
        %1042 = vmatprep.subr.mxu0 0.0
        %1043 = vmatpush1.xpose.msra.mxu0 0.0
        %1044 = vmatprep.subr.mxu0 0.0
        %1045 = vmatpush1.xpose.msra.mxu0 0.0
        %1046 = vmatprep.subr.mxu0 0.0
        %1047 = vmatpush1.xpose.msra.mxu0 0.0
        %1048 = vmatprep.subr.mxu0 0.0
        %1049 = vmatpush1.xpose.msra.mxu0 0.0
        %1050 = vmatprep.subr.mxu0 0.0
        %1051 = vmatpush1.xpose.msra.mxu0 0.0
        %1052 = vmatprep.subr.mxu0 0.0
        %1053 = vmatpush1.xpose.msra.mxu0 0.0
        %1054 = vmatprep.subr.mxu0 0.0
        %1055 = vmatpush1.xpose.msra.mxu0 0.0
        %1056 = vmatprep.subr.mxu0 0.0
        %1057 = vmatpush1.xpose.msra.mxu0 0.0
        %1058 = vmatprep.subr.mxu0 0.0
        %1059 = vmatpush1.xpose.msra.mxu0 0.0
        %1060 = vmatprep.subr.mxu0 0.0
        %1061 = vmatpush1.xpose.msra.mxu0 0.0
        %1062 = vmatprep.subr.mxu0 0.0
        %1063 = vmatpush1.xpose.msra.mxu0 0.0
        %1064 = vmatprep.mubr.f32.mxu0 0.0
        %1065 = vmatmul.mubr.f32.gmra.mrb[0].mxu0 %v992
        %v1066 = vpop.f32.mrb[0].mxu0
        %v1067 = vadd.f32 0.0, %v1066
        %v1068 = vpop.f32.mrb[0].mxu0
        %1069 = vmatprep.mubr.f32.mxu0 0.0
        %1070 = vmatmul.mubr.f32.gmra.mrb[0].mxu0 %v994
        %v1071 = vpop.f32.mrb[0].mxu0
        %v1072 = vadd.f32 0.0, %v1071
        %v1073 = vpop.f32.mrb[0].mxu0
        %1074 = vdwg.mxu0
        %v1075 = vmul.f32 %v1067, 0.35355338
        %v1076 = vmul.f32 %v1072, 0.35355338
        %vm1077 = vcmask 130048
        %v1078 = vsel %vm1077, %v1075, -inf
        %1079 = vmax.xlane.f32.xlu0 %v1078
        %v1080 = vpop.xlane.xlu0 %1079
        %v1081 = vsel %vm1077, %v1076, -inf
        %1082 = vmax.xlane.f32.xlu0 %v1081
        %v1083 = vpop.xlane.xlu0 %1082
        %v1084 = vsub.f32 %v1075, %v1080
        %v1085 = vsub.f32 %v1076, %v1083
        %v1086 = vmul.f32 %v1084, 1.442695
        %v1087 = vpow.pop %v1086
        %v1088 = vmul.f32 %v1085, 1.442695
        %v1089 = vpow.pop %v1088
        %v1090 = vsel %vm1077, %v1087, 0.0
        %1091 = vadd.xlane.f32.xlu0 %v1090
        %v1092 = vpop.xlane.xlu0 %1091
        %v1093 = vsel %vm1077, %v1089, 0.0
        %1094 = vadd.xlane.f32.xlu0 %v1093
        %v1095 = vpop.xlane.xlu0 %1094
        %v1096 = vrcp.pop %v1092
        %v1097 = vrcp.pop %v1095
        %v1098 = vmul.f32 %v1087, %v1096
        %v1099 = vmul.f32 %v1089, %v1097
        %v1100 = vpack.c.bf16 %v1099, %v1098
        %v1101 = vpack.c.bf16 %v982, %v979
        %1103 = vrot.lane.b32.xlu0 %v1101, 64
        %v1104 = vpop.permute.xlu0 %1103
        %v1107 = vsel %vm1077, %v1100, 0
        %1109 = vmatprep.subr.bf16.mxu0 0
        %1110 = vmatpush1.bf16.msra.mxu0 %v1104
        %1111 = vmatprep.subr.bf16.mxu0 0
        %1112 = vmatpush1.bf16.msra.mxu0 0
        %1113 = vmatprep.subr.bf16.mxu0 0
        %1114 = vmatpush1.bf16.msra.mxu0 0
        %1115 = vmatprep.subr.bf16.mxu0 0
        %1116 = vmatpush1.bf16.msra.mxu0 0
        %1117 = vmatprep.subr.bf16.mxu0 0
        %1118 = vmatpush1.bf16.msra.mxu0 0
        %1119 = vmatprep.subr.bf16.mxu0 0
        %1120 = vmatpush1.bf16.msra.mxu0 0
        %1121 = vmatprep.subr.bf16.mxu0 0
        %1122 = vmatpush1.bf16.msra.mxu0 0
        %1123 = vmatprep.subr.bf16.mxu0 0
        %1124 = vmatpush1.bf16.msra.mxu0 0
        %1125 = vmatprep.subr.bf16.mxu0 0
        %1126 = vmatpush1.bf16.msra.mxu0 0
        %1127 = vmatprep.subr.bf16.mxu0 0
        %1128 = vmatpush1.bf16.msra.mxu0 0
        %1129 = vmatprep.subr.bf16.mxu0 0
        %1130 = vmatpush1.bf16.msra.mxu0 0
        %1131 = vmatprep.subr.bf16.mxu0 0
        %1132 = vmatpush1.bf16.msra.mxu0 0
        %1133 = vmatprep.subr.bf16.mxu0 0
        %1134 = vmatpush1.bf16.msra.mxu0 0
        %1135 = vmatprep.subr.bf16.mxu0 0
        %1136 = vmatpush1.bf16.msra.mxu0 0
        %1137 = vmatprep.subr.bf16.mxu0 0
        %1138 = vmatpush1.bf16.msra.mxu0 0
        %1139 = vmatprep.subr.bf16.mxu0 0
        %1140 = vmatpush1.bf16.msra.mxu0 0
        %1141 = vmatprep.mubr.bf16.mxu0 0
        %1142 = vmatmul.mubr.bf16.gmra.mrb[0].mxu0 %v1107
        %v1143 = vpop.f32.mrb[0].mxu0
        %v1144 = vadd.f32 0.0, %v1143
        %v1145 = vpop.f32.mrb[0].mxu0
        %v1146 = vpop.f32.mrb[0].mxu0
        %v1147 = vadd.f32 0.0, %v1146
        %v1148 = vpop.f32.mrb[0].mxu0
        %1149 = vdwg.mxu0
        %1150 = vrot.lane.b32.xlu0 %v979, 120
        %v1151 = vpop.permute.xlu0 %1150
        %1152 = vrot.lane.b32.xlu0 %v982, 120
        %v1153 = vpop.permute.xlu0 %1152
        %1154 = vrot.lane.b32.xlu0 %v979, 88
        %v1155 = vpop.permute.xlu0 %1154
        %1156 = vrot.lane.b32.xlu0 %v982, 88
        %v1157 = vpop.permute.xlu0 %1156
        %v1158 = vsel %vm991, %v1151, 0
        %v1160 = vsel %vm991, %v1153, 0
        %v1162 = vsel %vm991, %v1155, 0
        %v1164 = vsel %vm991, %v1157, 0
        %1166 = vmatprep.subr.mxu0 0.0
        %1167 = vmatpush1.xpose.msra.mxu0 %v1162
        %1168 = vmatprep.subr.mxu0 0.0
        %1169 = vmatpush1.xpose.msra.mxu0 %v1164
        %1170 = vmatprep.subr.mxu0 0.0
        %1171 = vmatpush1.xpose.msra.mxu0 0.0
        %1172 = vmatprep.subr.mxu0 0.0
        %1173 = vmatpush1.xpose.msra.mxu0 0.0
        %1174 = vmatprep.subr.mxu0 0.0
        %1175 = vmatpush1.xpose.msra.mxu0 0.0
        %1176 = vmatprep.subr.mxu0 0.0
        %1177 = vmatpush1.xpose.msra.mxu0 0.0
        %1178 = vmatprep.subr.mxu0 0.0
        %1179 = vmatpush1.xpose.msra.mxu0 0.0
        %1180 = vmatprep.subr.mxu0 0.0
        %1181 = vmatpush1.xpose.msra.mxu0 0.0
        %1182 = vmatprep.subr.mxu0 0.0
        %1183 = vmatpush1.xpose.msra.mxu0 0.0
        %1184 = vmatprep.subr.mxu0 0.0
        %1185 = vmatpush1.xpose.msra.mxu0 0.0
        %1186 = vmatprep.subr.mxu0 0.0
        %1187 = vmatpush1.xpose.msra.mxu0 0.0
        %1188 = vmatprep.subr.mxu0 0.0
        %1189 = vmatpush1.xpose.msra.mxu0 0.0
        %1190 = vmatprep.subr.mxu0 0.0
        %1191 = vmatpush1.xpose.msra.mxu0 0.0
        %1192 = vmatprep.subr.mxu0 0.0
        %1193 = vmatpush1.xpose.msra.mxu0 0.0
        %1194 = vmatprep.subr.mxu0 0.0
        %1195 = vmatpush1.xpose.msra.mxu0 0.0
        %1196 = vmatprep.subr.mxu0 0.0
        %1197 = vmatpush1.xpose.msra.mxu0 0.0
        %1198 = vmatprep.subr.mxu0 0.0
        %1199 = vmatpush1.xpose.msra.mxu0 0.0
        %1200 = vmatprep.subr.mxu0 0.0
        %1201 = vmatpush1.xpose.msra.mxu0 0.0
        %1202 = vmatprep.subr.mxu0 0.0
        %1203 = vmatpush1.xpose.msra.mxu0 0.0
        %1204 = vmatprep.subr.mxu0 0.0
        %1205 = vmatpush1.xpose.msra.mxu0 0.0
        %1206 = vmatprep.subr.mxu0 0.0
        %1207 = vmatpush1.xpose.msra.mxu0 0.0
        %1208 = vmatprep.subr.mxu0 0.0
        %1209 = vmatpush1.xpose.msra.mxu0 0.0
        %1210 = vmatprep.subr.mxu0 0.0
        %1211 = vmatpush1.xpose.msra.mxu0 0.0
        %1212 = vmatprep.subr.mxu0 0.0
        %1213 = vmatpush1.xpose.msra.mxu0 0.0
        %1214 = vmatprep.subr.mxu0 0.0
        %1215 = vmatpush1.xpose.msra.mxu0 0.0
        %1216 = vmatprep.subr.mxu0 0.0
        %1217 = vmatpush1.xpose.msra.mxu0 0.0
        %1218 = vmatprep.subr.mxu0 0.0
        %1219 = vmatpush1.xpose.msra.mxu0 0.0
        %1220 = vmatprep.subr.mxu0 0.0
        %1221 = vmatpush1.xpose.msra.mxu0 0.0
        %1222 = vmatprep.subr.mxu0 0.0
        %1223 = vmatpush1.xpose.msra.mxu0 0.0
        %1224 = vmatprep.subr.mxu0 0.0
        %1225 = vmatpush1.xpose.msra.mxu0 0.0
        %1226 = vmatprep.subr.mxu0 0.0
        %1227 = vmatpush1.xpose.msra.mxu0 0.0
        %1228 = vmatprep.subr.mxu0 0.0
        %1229 = vmatpush1.xpose.msra.mxu0 0.0
        %1230 = vmatprep.mubr.f32.mxu0 0.0
        %1231 = vmatmul.mubr.f32.gmra.mrb[0].mxu0 %v1158
        %v1232 = vpop.f32.mrb[0].mxu0
        %v1233 = vadd.f32 0.0, %v1232
        %v1234 = vpop.f32.mrb[0].mxu0
        %1235 = vmatprep.mubr.f32.mxu0 0.0
        %1236 = vmatmul.mubr.f32.gmra.mrb[0].mxu0 %v1160
        %v1237 = vpop.f32.mrb[0].mxu0
        %v1238 = vadd.f32 0.0, %v1237
        %v1239 = vpop.f32.mrb[0].mxu0
        %1240 = vdwg.mxu0
        %v1241 = vmul.f32 %v1233, 0.35355338
        %v1242 = vmul.f32 %v1238, 0.35355338
        %v1243 = vsel %vm1077, %v1241, -inf
        %1244 = vmax.xlane.f32.xlu0 %v1243
        %v1245 = vpop.xlane.xlu0 %1244
        %v1246 = vsel %vm1077, %v1242, -inf
        %1247 = vmax.xlane.f32.xlu0 %v1246
        %v1248 = vpop.xlane.xlu0 %1247
        %v1249 = vsub.f32 %v1241, %v1245
        %v1250 = vsub.f32 %v1242, %v1248
        %v1251 = vmul.f32 %v1249, 1.442695
        %v1252 = vpow.pop %v1251
        %v1253 = vmul.f32 %v1250, 1.442695
        %v1254 = vpow.pop %v1253
        %v1255 = vsel %vm1077, %v1252, 0.0
        %1256 = vadd.xlane.f32.xlu0 %v1255
        %v1257 = vpop.xlane.xlu0 %1256
        %v1258 = vsel %vm1077, %v1254, 0.0
        %1259 = vadd.xlane.f32.xlu0 %v1258
        %v1260 = vpop.xlane.xlu0 %1259
        %v1261 = vrcp.pop %v1257
        %v1262 = vrcp.pop %v1260
        %v1263 = vmul.f32 %v1252, %v1261
        %v1264 = vmul.f32 %v1254, %v1262
        %v1265 = vpack.c.bf16 %v1264, %v1263
        %1266 = vrot.lane.b32.xlu0 %v1101, 56
        %v1267 = vpop.permute.xlu0 %1266
        %v1270 = vsel %vm1077, %v1265, 0
        %1272 = vmatprep.subr.bf16.mxu0 0
        %1273 = vmatpush1.bf16.msra.mxu0 %v1267
        %1274 = vmatprep.subr.bf16.mxu0 0
        %1275 = vmatpush1.bf16.msra.mxu0 0
        %1276 = vmatprep.subr.bf16.mxu0 0
        %1277 = vmatpush1.bf16.msra.mxu0 0
        %1278 = vmatprep.subr.bf16.mxu0 0
        %1279 = vmatpush1.bf16.msra.mxu0 0
        %1280 = vmatprep.subr.bf16.mxu0 0
        %1281 = vmatpush1.bf16.msra.mxu0 0
        %1282 = vmatprep.subr.bf16.mxu0 0
        %1283 = vmatpush1.bf16.msra.mxu0 0
        %1284 = vmatprep.subr.bf16.mxu0 0
        %1285 = vmatpush1.bf16.msra.mxu0 0
        %1286 = vmatprep.subr.bf16.mxu0 0
        %1287 = vmatpush1.bf16.msra.mxu0 0
        %1288 = vmatprep.subr.bf16.mxu0 0
        %1289 = vmatpush1.bf16.msra.mxu0 0
        %1290 = vmatprep.subr.bf16.mxu0 0
        %1291 = vmatpush1.bf16.msra.mxu0 0
        %1292 = vmatprep.subr.bf16.mxu0 0
        %1293 = vmatpush1.bf16.msra.mxu0 0
        %1294 = vmatprep.subr.bf16.mxu0 0
        %1295 = vmatpush1.bf16.msra.mxu0 0
        %1296 = vmatprep.subr.bf16.mxu0 0
        %1297 = vmatpush1.bf16.msra.mxu0 0
        %1298 = vmatprep.subr.bf16.mxu0 0
        %1299 = vmatpush1.bf16.msra.mxu0 0
        %1300 = vmatprep.subr.bf16.mxu0 0
        %1301 = vmatpush1.bf16.msra.mxu0 0
        %1302 = vmatprep.subr.bf16.mxu0 0
        %1303 = vmatpush1.bf16.msra.mxu0 0
        %1304 = vmatprep.mubr.bf16.mxu0 0
        %1305 = vmatmul.mubr.bf16.gmra.mrb[0].mxu0 %v1270
        %v1306 = vpop.f32.mrb[0].mxu0
        %v1307 = vadd.f32 0.0, %v1306
        %v1308 = vpop.f32.mrb[0].mxu0
        %v1309 = vpop.f32.mrb[0].mxu0
        %v1310 = vadd.f32 0.0, %v1309
        %v1311 = vpop.f32.mrb[0].mxu0
        %1312 = vdwg.mxu0
        %1313 = vrot.lane.b32.xlu0 %v979, 112
        %v1314 = vpop.permute.xlu0 %1313
        %1315 = vrot.lane.b32.xlu0 %v982, 112
        %v1316 = vpop.permute.xlu0 %1315
        %1317 = vrot.lane.b32.xlu0 %v979, 80
        %v1318 = vpop.permute.xlu0 %1317
        %1319 = vrot.lane.b32.xlu0 %v982, 80
        %v1320 = vpop.permute.xlu0 %1319
        %v1321 = vsel %vm991, %v1314, 0
        %v1323 = vsel %vm991, %v1316, 0
        %v1325 = vsel %vm991, %v1318, 0
        %v1327 = vsel %vm991, %v1320, 0
        %1329 = vmatprep.subr.mxu0 0.0
        %1330 = vmatpush1.xpose.msra.mxu0 %v1325
        %1331 = vmatprep.subr.mxu0 0.0
        %1332 = vmatpush1.xpose.msra.mxu0 %v1327
        %1333 = vmatprep.subr.mxu0 0.0
        %1334 = vmatpush1.xpose.msra.mxu0 0.0
        %1335 = vmatprep.subr.mxu0 0.0
        %1336 = vmatpush1.xpose.msra.mxu0 0.0
        %1337 = vmatprep.subr.mxu0 0.0
        %1338 = vmatpush1.xpose.msra.mxu0 0.0
        %1339 = vmatprep.subr.mxu0 0.0
        %1340 = vmatpush1.xpose.msra.mxu0 0.0
        %1341 = vmatprep.subr.mxu0 0.0
        %1342 = vmatpush1.xpose.msra.mxu0 0.0
        %1343 = vmatprep.subr.mxu0 0.0
        %1344 = vmatpush1.xpose.msra.mxu0 0.0
        %1345 = vmatprep.subr.mxu0 0.0
        %1346 = vmatpush1.xpose.msra.mxu0 0.0
        %1347 = vmatprep.subr.mxu0 0.0
        %1348 = vmatpush1.xpose.msra.mxu0 0.0
        %1349 = vmatprep.subr.mxu0 0.0
        %1350 = vmatpush1.xpose.msra.mxu0 0.0
        %1351 = vmatprep.subr.mxu0 0.0
        %1352 = vmatpush1.xpose.msra.mxu0 0.0
        %1353 = vmatprep.subr.mxu0 0.0
        %1354 = vmatpush1.xpose.msra.mxu0 0.0
        %1355 = vmatprep.subr.mxu0 0.0
        %1356 = vmatpush1.xpose.msra.mxu0 0.0
        %1357 = vmatprep.subr.mxu0 0.0
        %1358 = vmatpush1.xpose.msra.mxu0 0.0
        %1359 = vmatprep.subr.mxu0 0.0
        %1360 = vmatpush1.xpose.msra.mxu0 0.0
        %1361 = vmatprep.subr.mxu0 0.0
        %1362 = vmatpush1.xpose.msra.mxu0 0.0
        %1363 = vmatprep.subr.mxu0 0.0
        %1364 = vmatpush1.xpose.msra.mxu0 0.0
        %1365 = vmatprep.subr.mxu0 0.0
        %1366 = vmatpush1.xpose.msra.mxu0 0.0
        %1367 = vmatprep.subr.mxu0 0.0
        %1368 = vmatpush1.xpose.msra.mxu0 0.0
        %1369 = vmatprep.subr.mxu0 0.0
        %1370 = vmatpush1.xpose.msra.mxu0 0.0
        %1371 = vmatprep.subr.mxu0 0.0
        %1372 = vmatpush1.xpose.msra.mxu0 0.0
        %1373 = vmatprep.subr.mxu0 0.0
        %1374 = vmatpush1.xpose.msra.mxu0 0.0
        %1375 = vmatprep.subr.mxu0 0.0
        %1376 = vmatpush1.xpose.msra.mxu0 0.0
        %1377 = vmatprep.subr.mxu0 0.0
        %1378 = vmatpush1.xpose.msra.mxu0 0.0
        %1379 = vmatprep.subr.mxu0 0.0
        %1380 = vmatpush1.xpose.msra.mxu0 0.0
        %1381 = vmatprep.subr.mxu0 0.0
        %1382 = vmatpush1.xpose.msra.mxu0 0.0
        %1383 = vmatprep.subr.mxu0 0.0
        %1384 = vmatpush1.xpose.msra.mxu0 0.0
        %1385 = vmatprep.subr.mxu0 0.0
        %1386 = vmatpush1.xpose.msra.mxu0 0.0
        %1387 = vmatprep.subr.mxu0 0.0
        %1388 = vmatpush1.xpose.msra.mxu0 0.0
        %1389 = vmatprep.subr.mxu0 0.0
        %1390 = vmatpush1.xpose.msra.mxu0 0.0
        %1391 = vmatprep.subr.mxu0 0.0
        %1392 = vmatpush1.xpose.msra.mxu0 0.0
        %1393 = vmatprep.mubr.f32.mxu0 0.0
        %1394 = vmatmul.mubr.f32.gmra.mrb[0].mxu0 %v1321
        %v1395 = vpop.f32.mrb[0].mxu0
        %v1396 = vadd.f32 0.0, %v1395
        %v1397 = vpop.f32.mrb[0].mxu0
        %1398 = vmatprep.mubr.f32.mxu0 0.0
        %1399 = vmatmul.mubr.f32.gmra.mrb[0].mxu0 %v1323
        %v1400 = vpop.f32.mrb[0].mxu0
        %v1401 = vadd.f32 0.0, %v1400
        %v1402 = vpop.f32.mrb[0].mxu0
        %1403 = vdwg.mxu0
        %v1404 = vmul.f32 %v1396, 0.35355338
        %v1405 = vmul.f32 %v1401, 0.35355338
        %v1406 = vsel %vm1077, %v1404, -inf
        %1407 = vmax.xlane.f32.xlu0 %v1406
        %v1408 = vpop.xlane.xlu0 %1407
        %v1409 = vsel %vm1077, %v1405, -inf
        %1410 = vmax.xlane.f32.xlu0 %v1409
        %v1411 = vpop.xlane.xlu0 %1410
        %v1412 = vsub.f32 %v1404, %v1408
        %v1413 = vsub.f32 %v1405, %v1411
        %v1414 = vmul.f32 %v1412, 1.442695
        %v1415 = vpow.pop %v1414
        %v1416 = vmul.f32 %v1413, 1.442695
        %v1417 = vpow.pop %v1416
        %v1418 = vsel %vm1077, %v1415, 0.0
        %1419 = vadd.xlane.f32.xlu0 %v1418
        %v1420 = vpop.xlane.xlu0 %1419
        %v1421 = vsel %vm1077, %v1417, 0.0
        %1422 = vadd.xlane.f32.xlu0 %v1421
        %v1423 = vpop.xlane.xlu0 %1422
        %v1424 = vrcp.pop %v1420
        %v1425 = vrcp.pop %v1423
        %v1426 = vmul.f32 %v1415, %v1424
        %v1427 = vmul.f32 %v1417, %v1425
        %v1428 = vpack.c.bf16 %v1427, %v1426
        %1429 = vrot.lane.b32.xlu0 %v1101, 48
        %v1430 = vpop.permute.xlu0 %1429
        %v1433 = vsel %vm1077, %v1428, 0
        %1435 = vmatprep.subr.bf16.mxu0 0
        %1436 = vmatpush1.bf16.msra.mxu0 %v1430
        %1437 = vmatprep.subr.bf16.mxu0 0
        %1438 = vmatpush1.bf16.msra.mxu0 0
        %1439 = vmatprep.subr.bf16.mxu0 0
        %1440 = vmatpush1.bf16.msra.mxu0 0
        %1441 = vmatprep.subr.bf16.mxu0 0
        %1442 = vmatpush1.bf16.msra.mxu0 0
        %1443 = vmatprep.subr.bf16.mxu0 0
        %1444 = vmatpush1.bf16.msra.mxu0 0
        %1445 = vmatprep.subr.bf16.mxu0 0
        %1446 = vmatpush1.bf16.msra.mxu0 0
        %1447 = vmatprep.subr.bf16.mxu0 0
        %1448 = vmatpush1.bf16.msra.mxu0 0
        %1449 = vmatprep.subr.bf16.mxu0 0
        %1450 = vmatpush1.bf16.msra.mxu0 0
        %1451 = vmatprep.subr.bf16.mxu0 0
        %1452 = vmatpush1.bf16.msra.mxu0 0
        %1453 = vmatprep.subr.bf16.mxu0 0
        %1454 = vmatpush1.bf16.msra.mxu0 0
        %1455 = vmatprep.subr.bf16.mxu0 0
        %1456 = vmatpush1.bf16.msra.mxu0 0
        %1457 = vmatprep.subr.bf16.mxu0 0
        %1458 = vmatpush1.bf16.msra.mxu0 0
        %1459 = vmatprep.subr.bf16.mxu0 0
        %1460 = vmatpush1.bf16.msra.mxu0 0
        %1461 = vmatprep.subr.bf16.mxu0 0
        %1462 = vmatpush1.bf16.msra.mxu0 0
        %1463 = vmatprep.subr.bf16.mxu0 0
        %1464 = vmatpush1.bf16.msra.mxu0 0
        %1465 = vmatprep.subr.bf16.mxu0 0
        %1466 = vmatpush1.bf16.msra.mxu0 0
        %1467 = vmatprep.mubr.bf16.mxu0 0
        %1468 = vmatmul.mubr.bf16.gmra.mrb[0].mxu0 %v1433
        %v1469 = vpop.f32.mrb[0].mxu0
        %v1470 = vadd.f32 0.0, %v1469
        %v1471 = vpop.f32.mrb[0].mxu0
        %v1472 = vpop.f32.mrb[0].mxu0
        %v1473 = vadd.f32 0.0, %v1472
        %v1474 = vpop.f32.mrb[0].mxu0
        %1475 = vdwg.mxu0
        %1476 = vrot.lane.b32.xlu0 %v979, 104
        %v1477 = vpop.permute.xlu0 %1476
        %1478 = vrot.lane.b32.xlu0 %v982, 104
        %v1479 = vpop.permute.xlu0 %1478
        %1480 = vrot.lane.b32.xlu0 %v979, 72
        %v1481 = vpop.permute.xlu0 %1480
        %1482 = vrot.lane.b32.xlu0 %v982, 72
        %v1483 = vpop.permute.xlu0 %1482
        %v1484 = vsel %vm991, %v1477, 0
        %v1486 = vsel %vm991, %v1479, 0
        %v1488 = vsel %vm991, %v1481, 0
        %v1490 = vsel %vm991, %v1483, 0
        %1492 = vmatprep.subr.mxu0 0.0
        %1493 = vmatpush1.xpose.msra.mxu0 %v1488
        %1494 = vmatprep.subr.mxu0 0.0
        %1495 = vmatpush1.xpose.msra.mxu0 %v1490
        %1496 = vmatprep.subr.mxu0 0.0
        %1497 = vmatpush1.xpose.msra.mxu0 0.0
        %1498 = vmatprep.subr.mxu0 0.0
        %1499 = vmatpush1.xpose.msra.mxu0 0.0
        %1500 = vmatprep.subr.mxu0 0.0
        %1501 = vmatpush1.xpose.msra.mxu0 0.0
        %1502 = vmatprep.subr.mxu0 0.0
        %1503 = vmatpush1.xpose.msra.mxu0 0.0
        %1504 = vmatprep.subr.mxu0 0.0
        %1505 = vmatpush1.xpose.msra.mxu0 0.0
        %1506 = vmatprep.subr.mxu0 0.0
        %1507 = vmatpush1.xpose.msra.mxu0 0.0
        %1508 = vmatprep.subr.mxu0 0.0
        %1509 = vmatpush1.xpose.msra.mxu0 0.0
        %1510 = vmatprep.subr.mxu0 0.0
        %1511 = vmatpush1.xpose.msra.mxu0 0.0
        %1512 = vmatprep.subr.mxu0 0.0
        %1513 = vmatpush1.xpose.msra.mxu0 0.0
        %1514 = vmatprep.subr.mxu0 0.0
        %1515 = vmatpush1.xpose.msra.mxu0 0.0
        %1516 = vmatprep.subr.mxu0 0.0
        %1517 = vmatpush1.xpose.msra.mxu0 0.0
        %1518 = vmatprep.subr.mxu0 0.0
        %1519 = vmatpush1.xpose.msra.mxu0 0.0
        %1520 = vmatprep.subr.mxu0 0.0
        %1521 = vmatpush1.xpose.msra.mxu0 0.0
        %1522 = vmatprep.subr.mxu0 0.0
        %1523 = vmatpush1.xpose.msra.mxu0 0.0
        %1524 = vmatprep.subr.mxu0 0.0
        %1525 = vmatpush1.xpose.msra.mxu0 0.0
        %1526 = vmatprep.subr.mxu0 0.0
        %1527 = vmatpush1.xpose.msra.mxu0 0.0
        %1528 = vmatprep.subr.mxu0 0.0
        %1529 = vmatpush1.xpose.msra.mxu0 0.0
        %1530 = vmatprep.subr.mxu0 0.0
        %1531 = vmatpush1.xpose.msra.mxu0 0.0
        %1532 = vmatprep.subr.mxu0 0.0
        %1533 = vmatpush1.xpose.msra.mxu0 0.0
        %1534 = vmatprep.subr.mxu0 0.0
        %1535 = vmatpush1.xpose.msra.mxu0 0.0
        %1536 = vmatprep.subr.mxu0 0.0
        %1537 = vmatpush1.xpose.msra.mxu0 0.0
        %1538 = vmatprep.subr.mxu0 0.0
        %1539 = vmatpush1.xpose.msra.mxu0 0.0
        %1540 = vmatprep.subr.mxu0 0.0
        %1541 = vmatpush1.xpose.msra.mxu0 0.0
        %1542 = vmatprep.subr.mxu0 0.0
        %1543 = vmatpush1.xpose.msra.mxu0 0.0
        %1544 = vmatprep.subr.mxu0 0.0
        %1545 = vmatpush1.xpose.msra.mxu0 0.0
        %1546 = vmatprep.subr.mxu0 0.0
        %1547 = vmatpush1.xpose.msra.mxu0 0.0
        %1548 = vmatprep.subr.mxu0 0.0
        %1549 = vmatpush1.xpose.msra.mxu0 0.0
        %1550 = vmatprep.subr.mxu0 0.0
        %1551 = vmatpush1.xpose.msra.mxu0 0.0
        %1552 = vmatprep.subr.mxu0 0.0
        %1553 = vmatpush1.xpose.msra.mxu0 0.0
        %1554 = vmatprep.subr.mxu0 0.0
        %1555 = vmatpush1.xpose.msra.mxu0 0.0
        %1556 = vmatprep.mubr.f32.mxu0 0.0
        %1557 = vmatmul.mubr.f32.gmra.mrb[0].mxu0 %v1484
        %v1558 = vpop.f32.mrb[0].mxu0
        %v1559 = vadd.f32 0.0, %v1558
        %v1560 = vpop.f32.mrb[0].mxu0
        %1561 = vmatprep.mubr.f32.mxu0 0.0
        %1562 = vmatmul.mubr.f32.gmra.mrb[0].mxu0 %v1486
        %v1563 = vpop.f32.mrb[0].mxu0
        %v1564 = vadd.f32 0.0, %v1563
        %v1565 = vpop.f32.mrb[0].mxu0
        %1566 = vdwg.mxu0
        %v1567 = vmul.f32 %v1559, 0.35355338
        %v1568 = vmul.f32 %v1564, 0.35355338
        %v1569 = vsel %vm1077, %v1567, -inf
        %1570 = vmax.xlane.f32.xlu0 %v1569
        %v1571 = vpop.xlane.xlu0 %1570
        %v1572 = vsel %vm1077, %v1568, -inf
        %1573 = vmax.xlane.f32.xlu0 %v1572
        %v1574 = vpop.xlane.xlu0 %1573
        %v1575 = vsub.f32 %v1567, %v1571
        %v1576 = vsub.f32 %v1568, %v1574
        %v1577 = vmul.f32 %v1575, 1.442695
        %v1578 = vpow.pop %v1577
        %v1579 = vmul.f32 %v1576, 1.442695
        %v1580 = vpow.pop %v1579
        %v1581 = vsel %vm1077, %v1578, 0.0
        %1582 = vadd.xlane.f32.xlu0 %v1581
        %v1583 = vpop.xlane.xlu0 %1582
        %v1584 = vsel %vm1077, %v1580, 0.0
        %1585 = vadd.xlane.f32.xlu0 %v1584
        %v1586 = vpop.xlane.xlu0 %1585
        %v1587 = vrcp.pop %v1583
        %v1588 = vrcp.pop %v1586
        %v1589 = vmul.f32 %v1578, %v1587
        %v1590 = vmul.f32 %v1580, %v1588
        %v1591 = vpack.c.bf16 %v1590, %v1589
        %1592 = vrot.lane.b32.xlu0 %v1101, 40
        %v1593 = vpop.permute.xlu0 %1592
        %v1596 = vsel %vm1077, %v1591, 0
        %1598 = vmatprep.subr.bf16.mxu0 0
        %1599 = vmatpush1.bf16.msra.mxu0 %v1593
        %1600 = vmatprep.subr.bf16.mxu0 0
        %1601 = vmatpush1.bf16.msra.mxu0 0
        %1602 = vmatprep.subr.bf16.mxu0 0
        %1603 = vmatpush1.bf16.msra.mxu0 0
        %1604 = vmatprep.subr.bf16.mxu0 0
        %1605 = vmatpush1.bf16.msra.mxu0 0
        %1606 = vmatprep.subr.bf16.mxu0 0
        %1607 = vmatpush1.bf16.msra.mxu0 0
        %1608 = vmatprep.subr.bf16.mxu0 0
        %1609 = vmatpush1.bf16.msra.mxu0 0
        %1610 = vmatprep.subr.bf16.mxu0 0
        %1611 = vmatpush1.bf16.msra.mxu0 0
        %1612 = vmatprep.subr.bf16.mxu0 0
        %1613 = vmatpush1.bf16.msra.mxu0 0
        %1614 = vmatprep.subr.bf16.mxu0 0
        %1615 = vmatpush1.bf16.msra.mxu0 0
        %1616 = vmatprep.subr.bf16.mxu0 0
        %1617 = vmatpush1.bf16.msra.mxu0 0
        %1618 = vmatprep.subr.bf16.mxu0 0
        %1619 = vmatpush1.bf16.msra.mxu0 0
        %1620 = vmatprep.subr.bf16.mxu0 0
        %1621 = vmatpush1.bf16.msra.mxu0 0
        %1622 = vmatprep.subr.bf16.mxu0 0
        %1623 = vmatpush1.bf16.msra.mxu0 0
        %1624 = vmatprep.subr.bf16.mxu0 0
        %1625 = vmatpush1.bf16.msra.mxu0 0
        %1626 = vmatprep.subr.bf16.mxu0 0
        %1627 = vmatpush1.bf16.msra.mxu0 0
        %1628 = vmatprep.subr.bf16.mxu0 0
        %1629 = vmatpush1.bf16.msra.mxu0 0
        %1630 = vmatprep.mubr.bf16.mxu0 0
        %1631 = vmatmul.mubr.bf16.gmra.mrb[0].mxu0 %v1596
        %v1632 = vpop.f32.mrb[0].mxu0
        %v1633 = vadd.f32 0.0, %v1632
        %v1634 = vpop.f32.mrb[0].mxu0
        %v1635 = vpop.f32.mrb[0].mxu0
        %v1636 = vadd.f32 0.0, %v1635
        %v1637 = vpop.f32.mrb[0].mxu0
        %1638 = vdwg.mxu0
        %1641 = vrot.lane.b32.xlu0 %v1307, 8
        %v1642 = vpop.permute.xlu0 %1641
        %1643 = vrot.lane.b32.xlu0 %v1310, 8
        %v1644 = vpop.permute.xlu0 %1643
        %1649 = vrot.lane.b32.xlu0 %v1470, 16
        %v1650 = vpop.permute.xlu0 %1649
        %1651 = vrot.lane.b32.xlu0 %v1473, 16
        %v1652 = vpop.permute.xlu0 %1651
        %1657 = vrot.lane.b32.xlu0 %v1633, 24
        %v1658 = vpop.permute.xlu0 %1657
        %1659 = vrot.lane.b32.xlu0 %v1636, 24
        %v1660 = vpop.permute.xlu0 %1659
        %v1663 = vsel %vm991, %v1144, %v1642
        %v1664 = vsel %vm991, %v1147, %v1644
        %v1665 = vsel %vm1077, %v1663, %v1650
        %v1666 = vsel %vm1077, %v1664, %v1652
        %vm1667 = vcmask 195584
        %v1668 = vsel %vm1667, %v1665, %v1658
        %v1669 = vsel %vm1667, %v1666, %v1660
        %v1670 = vpack.c.bf16 %v1669, %v1668
        %v1671 = vld [vmem:[%s752] sm:$0xf]
        %v1672 = vld [vmem:[%s752 + $0x4] sm:$0xf]
        %v1673 = vld [vmem:[%s752 + $0x8] sm:$0xf]
        %v1674 = vld [vmem:[%s752 + $0xc] sm:$0xf]
        %v1675 = vld [vmem:[%s755] sm:$0x1]
        %v1677 = vlaneseq
        %v1678 = vshrl.u32 %v1677, 7
        %v1679 = vsub.s32 0, %v1678
        %v1680 = vrot.slane %v1675, %v1679
        %v1686 = vunpack.c.l.b16 %v1671
        %v1687 = vunpack.c.l.b16 %v1672
        %v1688 = vunpack.c.l.b16 %v1673
        %v1689 = vunpack.c.l.b16 %v1674
        %v1690 = vpack.c.b16 %v1687, %v1686
        %v1691 = vpack.c.b16 %v1689, %v1688
        %v1695 = vsel %vm873, %v1670, 0
        %1697 = vmatprep.subr.bf16.mxu0 0
        %1698 = vmatpush1.bf16.msra.mxu0 %v1690
        %1699 = vmatprep.subr.bf16.mxu0 0
        %1700 = vmatpush1.bf16.msra.mxu0 %v1691
        %1701 = vmatprep.subr.bf16.mxu0 0
        %1702 = vmatpush1.bf16.msra.mxu0 0
        %1703 = vmatprep.subr.bf16.mxu0 0
        %1704 = vmatpush1.bf16.msra.mxu0 0
        %1705 = vmatprep.subr.bf16.mxu0 0
        %1706 = vmatpush1.bf16.msra.mxu0 0
        %1707 = vmatprep.subr.bf16.mxu0 0
        %1708 = vmatpush1.bf16.msra.mxu0 0
        %1709 = vmatprep.subr.bf16.mxu0 0
        %1710 = vmatpush1.bf16.msra.mxu0 0
        %1711 = vmatprep.subr.bf16.mxu0 0
        %1712 = vmatpush1.bf16.msra.mxu0 0
        %1713 = vmatprep.subr.bf16.mxu0 0
        %1714 = vmatpush1.bf16.msra.mxu0 0
        %1715 = vmatprep.subr.bf16.mxu0 0
        %1716 = vmatpush1.bf16.msra.mxu0 0
        %1717 = vmatprep.subr.bf16.mxu0 0
        %1718 = vmatpush1.bf16.msra.mxu0 0
        %1719 = vmatprep.subr.bf16.mxu0 0
        %1720 = vmatpush1.bf16.msra.mxu0 0
        %1721 = vmatprep.subr.bf16.mxu0 0
        %1722 = vmatpush1.bf16.msra.mxu0 0
        %1723 = vmatprep.subr.bf16.mxu0 0
        %1724 = vmatpush1.bf16.msra.mxu0 0
        %1725 = vmatprep.subr.bf16.mxu0 0
        %1726 = vmatpush1.bf16.msra.mxu0 0
        %1727 = vmatprep.subr.bf16.mxu0 0
        %1728 = vmatpush1.bf16.msra.mxu0 0
        %1729 = vmatprep.mubr.bf16.mxu0 0
        %1730 = vmatmul.mubr.bf16.gmra.mrb[0].mxu0 %v1695
        %v1731 = vpop.f32.mrb[0].mxu0
        %v1732 = vadd.f32 %v1680, %v1731
        %v1733 = vpop.f32.mrb[0].mxu0
        %v1734 = vpop.f32.mrb[0].mxu0
        %v1735 = vadd.f32 %v1680, %v1734
        %v1736 = vpop.f32.mrb[0].mxu0
        %1737 = vdwg.mxu0
        %v1738 = vadd.f32 %v869, %v1732
        %v1739 = vadd.f32 %v870, %v1735
        %v1740 = vld [vmem:[%s758] sm:$0x1]
        %v1741 = vld [vmem:[%s761] sm:$0x1]
        %v1742 = vsel %vm873, %v1738, 0.0
        %1743 = vadd.xlane.f32.xlu0 %v1742
        %v1744 = vpop.xlane.xlu0 %1743
        %v1745 = vsel %vm873, %v1739, 0.0
        %1746 = vadd.xlane.f32.xlu0 %v1745
        %v1747 = vpop.xlane.xlu0 %1746
        %v1748 = vmul.f32 %v1744, %v880
        %v1749 = vmul.f32 %v1747, %v880
        %v1750 = vsub.f32 %v1738, %v1748
        %v1751 = vsub.f32 %v1739, %v1749
        %v1752 = vmul.f32 %v1750, %v1750
        %v1753 = vmul.f32 %v1751, %v1751
        %v1754 = vsel %vm873, %v1752, 0.0
        %1755 = vadd.xlane.f32.xlu0 %v1754
        %v1756 = vpop.xlane.xlu0 %1755
        %v1757 = vsel %vm873, %v1753, 0.0
        %1758 = vadd.xlane.f32.xlu0 %v1757
        %v1759 = vpop.xlane.xlu0 %1758
        %v1760 = vmul.f32 %v1756, %v880
        %v1761 = vmul.f32 %v1759, %v880
        %v1762 = vadd.f32 %v1760, 1e-06
        %v1763 = vadd.f32 %v1761, 1e-06
        %v1764 = vrsqrt.pop %v1762
        %v1765 = vrsqrt.pop %v1763
        %v1766 = vmul.f32 %v1750, %v1764
        %v1767 = vmul.f32 %v1751, %v1765
        %v1769 = vlaneseq
        %v1770 = vshrl.u32 %v1769, 7
        %v1771 = vsub.s32 0, %v1770
        %v1772 = vrot.slane %v1740, %v1771
        %v1774 = vmul.f32 %v1766, %v1772
        %v1775 = vmul.f32 %v1767, %v1772
        %v1777 = vlaneseq
        %v1778 = vshrl.u32 %v1777, 7
        %v1779 = vsub.s32 0, %v1778
        %v1780 = vrot.slane %v1741, %v1779
        %v1782 = vadd.f32 %v1774, %v1780
        %v1783 = vadd.f32 %v1775, %v1780
        %v1784 = vpack.c.bf16 %v1783, %v1782
        %v1785 = vld [vmem:[%s766] sm:$0xf]
        %v1786 = vld [vmem:[%s766 + $0x4] sm:$0xf]
        %v1787 = vld [vmem:[%s766 + $0x8] sm:$0xf]
        %v1788 = vld [vmem:[%s766 + $0xc] sm:$0xf]
        %v1789 = vld [vmem:[%s769] sm:$0x1]
        %v1791 = vlaneseq
        %v1792 = vshrl.u32 %v1791, 7
        %v1793 = vsub.s32 0, %v1792
        %v1794 = vrot.slane %v1789, %v1793
        %v1800 = vunpack.c.l.b16 %v1785
        %v1801 = vunpack.c.l.b16 %v1786
        %v1802 = vunpack.c.l.b16 %v1787
        %v1803 = vunpack.c.l.b16 %v1788
        %v1804 = vpack.c.b16 %v1801, %v1800
        %v1805 = vpack.c.b16 %v1803, %v1802
        %v1809 = vsel %vm873, %v1784, 0
        %1811 = vmatprep.subr.bf16.mxu0 0
        %1812 = vmatpush1.bf16.msra.mxu0 %v1804
        %1813 = vmatprep.subr.bf16.mxu0 0
        %1814 = vmatpush1.bf16.msra.mxu0 %v1805
        %1815 = vmatprep.subr.bf16.mxu0 0
        %1816 = vmatpush1.bf16.msra.mxu0 0
        %1817 = vmatprep.subr.bf16.mxu0 0
        %1818 = vmatpush1.bf16.msra.mxu0 0
        %1819 = vmatprep.subr.bf16.mxu0 0
        %1820 = vmatpush1.bf16.msra.mxu0 0
        %1821 = vmatprep.subr.bf16.mxu0 0
        %1822 = vmatpush1.bf16.msra.mxu0 0
        %1823 = vmatprep.subr.bf16.mxu0 0
        %1824 = vmatpush1.bf16.msra.mxu0 0
        %1825 = vmatprep.subr.bf16.mxu0 0
        %1826 = vmatpush1.bf16.msra.mxu0 0
        %1827 = vmatprep.subr.bf16.mxu0 0
        %1828 = vmatpush1.bf16.msra.mxu0 0
        %1829 = vmatprep.subr.bf16.mxu0 0
        %1830 = vmatpush1.bf16.msra.mxu0 0
        %1831 = vmatprep.subr.bf16.mxu0 0
        %1832 = vmatpush1.bf16.msra.mxu0 0
        %1833 = vmatprep.subr.bf16.mxu0 0
        %1834 = vmatpush1.bf16.msra.mxu0 0
        %1835 = vmatprep.subr.bf16.mxu0 0
        %1836 = vmatpush1.bf16.msra.mxu0 0
        %1837 = vmatprep.subr.bf16.mxu0 0
        %1838 = vmatpush1.bf16.msra.mxu0 0
        %1839 = vmatprep.subr.bf16.mxu0 0
        %1840 = vmatpush1.bf16.msra.mxu0 0
        %1841 = vmatprep.subr.bf16.mxu0 0
        %1842 = vmatpush1.bf16.msra.mxu0 0
        %1843 = vmatprep.mubr.bf16.mxu0 0
        %1844 = vmatmul.mubr.bf16.gmra.mrb[0].mxu0 %v1809
        %v1845 = vpop.f32.mrb[0].mxu0
        %v1846 = vadd.f32 %v1794, %v1845
        %v1847 = vpop.f32.mrb[0].mxu0
        %v1848 = vpop.f32.mrb[0].mxu0
        %v1849 = vadd.f32 %v1794, %v1848
        %v1850 = vpop.f32.mrb[0].mxu0
        %1851 = vdwg.mxu0
        %v1852 = vmul.f32 %v1846, 0.5
        %v1853 = vmul.f32 %v1849, 0.5
        %v1854 = vmul.f32 %v1846, 0.044715
        %v1855 = vmul.f32 %v1849, 0.044715
        %v1856 = vmul.f32 %v1854, %v1846
        %v1857 = vmul.f32 %v1855, %v1849
        %v1858 = vmul.f32 %v1856, %v1846
        %v1859 = vmul.f32 %v1857, %v1849
        %v1860 = vadd.f32 %v1846, %v1858
        %v1861 = vadd.f32 %v1849, %v1859
        %v1862 = vmul.f32 %v1860, 0.7978846
        %v1863 = vmul.f32 %v1861, 0.7978846
        %v1864 = vtanh.pop %v1862
        %v1865 = vtanh.pop %v1863
        %v1866 = vadd.f32 %v1864, 1.0
        %v1867 = vadd.f32 %v1865, 1.0
        %v1868 = vmul.f32 %v1852, %v1866
        %v1869 = vmul.f32 %v1853, %v1867
        %v1870 = vpack.c.bf16 %v1869, %v1868
        %v1871 = vld [vmem:[%s774] sm:$0xf]
        %v1872 = vld [vmem:[%s774 + $0x4] sm:$0xf]
        %v1873 = vld [vmem:[%s774 + $0x8] sm:$0xf]
        %v1874 = vld [vmem:[%s774 + $0xc] sm:$0xf]
        %v1875 = vld [vmem:[%s774 + $0x10] sm:$0xf]
        %v1876 = vld [vmem:[%s774 + $0x14] sm:$0xf]
        %v1877 = vld [vmem:[%s774 + $0x18] sm:$0xf]
        %v1878 = vld [vmem:[%s774 + $0x1c] sm:$0xf]
        %v1879 = vld [vmem:[%s777] sm:$0x1]
        %v1881 = vlaneseq
        %v1882 = vshrl.u32 %v1881, 7
        %v1883 = vsub.s32 0, %v1882
        %v1884 = vrot.slane %v1879, %v1883
        %v1894 = vunpack.c.l.b16 %v1871
        %v1895 = vunpack.c.l.b16 %v1872
        %v1896 = vunpack.c.l.b16 %v1873
        %v1897 = vunpack.c.l.b16 %v1874
        %v1898 = vunpack.c.l.b16 %v1875
        %v1899 = vunpack.c.l.b16 %v1876
        %v1900 = vunpack.c.l.b16 %v1877
        %v1901 = vunpack.c.l.b16 %v1878
        %v1902 = vpack.c.b16 %v1895, %v1894
        %v1903 = vpack.c.b16 %v1897, %v1896
        %v1904 = vpack.c.b16 %v1899, %v1898
        %v1905 = vpack.c.b16 %v1901, %v1900
        %vm1910 = vcmask 523264
        %v1912 = vsel %vm1910, %v1870, 0
        %1914 = vmatprep.subr.bf16.mxu0 0
        %1915 = vmatpush1.bf16.msra.mxu0 %v1902
        %1916 = vmatprep.subr.bf16.mxu0 0
        %1917 = vmatpush1.bf16.msra.mxu0 %v1903
        %1918 = vmatprep.subr.bf16.mxu0 0
        %1919 = vmatpush1.bf16.msra.mxu0 %v1904
        %1920 = vmatprep.subr.bf16.mxu0 0
        %1921 = vmatpush1.bf16.msra.mxu0 %v1905
        %1922 = vmatprep.subr.bf16.mxu0 0
        %1923 = vmatpush1.bf16.msra.mxu0 0
        %1924 = vmatprep.subr.bf16.mxu0 0
        %1925 = vmatpush1.bf16.msra.mxu0 0
        %1926 = vmatprep.subr.bf16.mxu0 0
        %1927 = vmatpush1.bf16.msra.mxu0 0
        %1928 = vmatprep.subr.bf16.mxu0 0
        %1929 = vmatpush1.bf16.msra.mxu0 0
        %1930 = vmatprep.subr.bf16.mxu0 0
        %1931 = vmatpush1.bf16.msra.mxu0 0
        %1932 = vmatprep.subr.bf16.mxu0 0
        %1933 = vmatpush1.bf16.msra.mxu0 0
        %1934 = vmatprep.subr.bf16.mxu0 0
        %1935 = vmatpush1.bf16.msra.mxu0 0
        %1936 = vmatprep.subr.bf16.mxu0 0
        %1937 = vmatpush1.bf16.msra.mxu0 0
        %1938 = vmatprep.subr.bf16.mxu0 0
        %1939 = vmatpush1.bf16.msra.mxu0 0
        %1940 = vmatprep.subr.bf16.mxu0 0
        %1941 = vmatpush1.bf16.msra.mxu0 0
        %1942 = vmatprep.subr.bf16.mxu0 0
        %1943 = vmatpush1.bf16.msra.mxu0 0
        %1944 = vmatprep.subr.bf16.mxu0 0
        %1945 = vmatpush1.bf16.msra.mxu0 0
        %1946 = vmatprep.mubr.bf16.mxu0 0
        %1947 = vmatmul.mubr.bf16.gmra.mrb[0].mxu0 %v1912
        %v1948 = vpop.f32.mrb[0].mxu0
        %v1949 = vadd.f32 %v1884, %v1948
        %v1950 = vpop.f32.mrb[0].mxu0
        %v1951 = vpop.f32.mrb[0].mxu0
        %v1952 = vadd.f32 %v1884, %v1951
        %v1953 = vpop.f32.mrb[0].mxu0
        %1954 = vdwg.mxu0
        %v1955 = vadd.f32 %v1738, %v1949
        %v1956 = vadd.f32 %v1739, %v1952
        %p1957 = scmp.lt.s32.totalorder %s37, 1
        // Predicated region
        $region97: #{_lambda_.1} parent=91 // pred_check
          %p1958 = pneg %p1957
        $region98: #{_lambda_.1} parent=91 // pred_check_branch
          %1960 = sbr.rel (%p1958) target = $region100
        $region99: #{_lambda_.1} parent=91 // pred_region
          %1961 = vst.msk [vmem:[%s728] sm:$0xff] %vm873, %v1955
          %1962 = vst.msk [vmem:[%s728 + $0x8] sm:$0xff] %vm873, %v1956
        $region100: #{_lambda_.1} parent=91 // pred_fallthru
          _
        %p1963 = scmp.eq.s32.totalorder %s37, 1
        // Predicated region
        $region101: #{_lambda_.1} parent=91 // pred_check
          %p1964 = pneg %p1963
        $region102: #{_lambda_.1} parent=91 // pred_check_branch
          %1966 = sbr.rel (%p1964) target = $region104
        $region103: #{_lambda_.1} parent=91 // pred_region
          %v1967 = vld [vmem:[%s16] sm:$0x1]
          %v1968 = vld [vmem:[%s17] sm:$0x1]
          %v1969 = vsel %vm873, %v1955, 0.0
          %1970 = vadd.xlane.f32.xlu0 %v1969
          %v1971 = vpop.xlane.xlu0 %1970
          %v1972 = vsel %vm873, %v1956, 0.0
          %1973 = vadd.xlane.f32.xlu0 %v1972
          %v1974 = vpop.xlane.xlu0 %1973
          %v1975 = vmul.f32 %v1971, %v880
          %v1976 = vmul.f32 %v1974, %v880
          %v1977 = vsub.f32 %v1955, %v1975
          %v1978 = vsub.f32 %v1956, %v1976
          %v1979 = vmul.f32 %v1977, %v1977
          %v1980 = vmul.f32 %v1978, %v1978
          %v1981 = vsel %vm873, %v1979, 0.0
          %1982 = vadd.xlane.f32.xlu0 %v1981
          %v1983 = vpop.xlane.xlu0 %1982
          %v1984 = vsel %vm873, %v1980, 0.0
          %1985 = vadd.xlane.f32.xlu0 %v1984
          %v1986 = vpop.xlane.xlu0 %1985
          %v1987 = vmul.f32 %v1983, %v880
          %v1988 = vmul.f32 %v1986, %v880
          %v1989 = vadd.f32 %v1987, 1e-06
          %v1990 = vadd.f32 %v1988, 1e-06
          %v1991 = vrsqrt.pop %v1989
          %v1992 = vrsqrt.pop %v1990
          %v1993 = vmul.f32 %v1977, %v1991
          %v1994 = vmul.f32 %v1978, %v1992
          %v1996 = vlaneseq
          %v1997 = vshrl.u32 %v1996, 7
          %v1998 = vsub.s32 0, %v1997
          %v1999 = vrot.slane %v1967, %v1998
          %v2001 = vmul.f32 %v1993, %v1999
          %v2002 = vmul.f32 %v1994, %v1999
          %v2004 = vlaneseq
          %v2005 = vshrl.u32 %v2004, 7
          %v2006 = vsub.s32 0, %v2005
          %v2007 = vrot.slane %v1968, %v2006
          %v2009 = vadd.f32 %v2001, %v2007
          %v2010 = vadd.f32 %v2002, %v2007
          %2011 = vst.msk [vmem:[%s728] sm:$0xff] %vm873, %v2009
          %2012 = vst.msk [vmem:[%s728 + $0x8] sm:$0xff] %vm873, %v2010
        $region104: #{_lambda_.1} parent=91 // pred_fallthru
          _
        %s2013 = sand.u32 %s495, 1
        %s2014 = scalar_lea.sflag [#allocation3], %s2013
        %s2015 = sand.u32 %s495, 1
        %s2016 = smul.addr %s2015, 16
        %s2017 = scalar_lea.vmem [#allocation2], %s2016
        // Predicated region
        $region105: #{_lambda_.1} parent=91 // pred_check
          %p2018 = pneg %p505
        $region106: #{_lambda_.1} parent=91 // pred_check_branch
          %2020 = sbr.rel (%p2018) target = $region108
        $region107: #{_lambda_.1} parent=91 // pred_region
          %s2022 = ssub.s32 256, 256
          %2023 = vsyncadd %s2014, %s2022
          %s2024 = smul.addr %s36, 2
          %s2025 = smul.addr %s2024, 128
          %s2026 = scalar_lea.hbm %s18, %s2025
          %s2027 = sshll.u32 %s2017, 4
          %s2028 = int_to_ptr.vmem [resolvable:$true] %s2027
          %2033 = dma.vmem_to_hbm [thread:$0]  %s2028, 256, %s2026, %s2014, 128, 128, 8
        $region108: #{_lambda_.1} parent=91 // pred_fallthru
          _
      $region92: #{_lambda_.1} parent=5 // pred_fallthru
        _
      %p2034 = scmp.le.s32.totalorder 2, %s27
      // Predicated region
      $region109: #{_lambda_.1} parent=5 // pred_check
        %p2035 = pneg %p2034
      $region110: #{_lambda_.1} parent=5 // pred_check_branch
        %2037 = sbr.rel (%p2035) target = $region112
      $region111: #{_lambda_.1} parent=5 // pred_region
        %s2038 = ssub.s32 %s27, 2
        // Predicated region
        $region113: #{_lambda_.1} parent=111 // pred_check
          %p2039 = pneg %p511
        $region114: #{_lambda_.1} parent=111 // pred_check_branch
          %2041 = sbr.rel (%p2039) target = $region116
        $region115: #{_lambda_.1} parent=111 // pred_region
          %s2042 = sand.u32 %s496, 1
          %s2043 = scalar_lea.sflag [#allocation3], %s2042
          %s2044 = sand.u32 %s496, 1
          %s2045 = smul.addr %s2044, 16
          %s2046 = scalar_lea.vmem [#allocation2], %s2045
          %2047 = dma.done %s2043, 256
        $region116: #{_lambda_.1} parent=111 // pred_fallthru
          _
      $region112: #{_lambda_.1} parent=5 // pred_fallthru
        _
    $region6: #{_lambda_.1} parent=1 // loop_footer
      %s31 = sadd.s32 1, %s27
    $region7: #{_lambda_.1} parent=1 // loop_footer_branch
      %26 = sbr.rel target = $region3
    $region8: #{_lambda_.1} parent=1 // loop_exit
      _
    %2048 = vsyncpa [#allocation3], 1
    %s2049 = scalar_lea.sflag [#allocation3], 1
    %2050 = vsyncpa %s2049, 1

</llo_original>
